<compile_context>
chip_gen: v7x
topology: tpu7x:2x2x1
jax: 0.10.0
libtpu: 0.0.40
codegen_flags: <defaults>
</compile_context>

<pallas_src>
import jax
import jax.numpy as jnp
from jax.experimental import pallas as pl
from jax.experimental.pallas import tpu as pltpu


# ------------------------- model constants -------------------------

C, H, W = 3, 16, 16            # input image channels / spatial (NCHW at wrapper level)
CHW = C * H * W                # 768  -> multiple of 128 (lane aligned)
NUM_WS = 4                     # og_G.num_ws (synthetic)
W_DIM = 32                     # style vector dim
WS_DIM = NUM_WS * W_DIM        # 128  -> lane aligned
HID_E = 128                    # encoder hidden width (padded to full lane width)
HID_G = 128                    # generator hidden width
N_ITERS = 5                    # self.n_iters
TILE_M = 8                     # batch tile (raise to 128+ for real batches)


# ------------------------- fused Pallas kernel -------------------------

def _restyle_fused_kernel(x_ref, z0_ref, himg0_ref,
                          we1in_ref, we1img_ref, be1_ref,
                          we2g1_ref, be2g1_ref,
                          wg2_ref, bg2_ref,
                          img_ref):
    f32 = jnp.float32
    bf16 = jnp.bfloat16
    m = x_ref.shape[0]

    # Loop-invariant encoder half (input image projection), with be1 folded in once.
    h_in = jnp.dot(x_ref[...], we1in_ref[...], preferred_element_type=f32) + be1_ref[...]

    # Only 1-vreg constants hoisted; large weights are indexed at their use sites below.
    be2g1 = be2g1_ref[...]                                            # (1, HID_G) f32
    bg2 = bg2_ref[...]                                                # (1, CHW)   f32

    # Carried quantity: zb = ws @ Wg1 + bg1.  Bootstrap term avg_ws@Wg1+bg1 precomputed.
    zb = jnp.broadcast_to(z0_ref[...], (m, HID_G))                    # (m, HID_G) f32

    # --- iteration 0: avg_img = G(avg_ws) is param-only; its encoder projection himg0 is
    #     a precomputed constant, so no K=768 matmul is needed here.
    h1 = jnp.maximum(h_in + himg0_ref[...], 0.0)
    zb = zb + jnp.dot(h1.astype(bf16), we2g1_ref[...], preferred_element_type=f32) + be2g1

    # --- iterations 1 .. N_ITERS-1 (generator feedback + encoder + residual update)
    for _ in range(N_ITERS - 1):
        h = jnp.maximum(zb, 0.0)
        img_bf = jnp.tanh(
            jnp.dot(h.astype(bf16), wg2_ref[...], preferred_element_type=f32) + bg2
        ).astype(bf16)                                                # loop-carried in bf16
        h1 = jnp.maximum(
            h_in + jnp.dot(img_bf, we1img_ref[...], preferred_element_type=f32), 0.0)
        zb = zb + jnp.dot(h1.astype(bf16), we2g1_ref[...], preferred_element_type=f32) + be2g1

    # --- final generator output, stored in f32 (no trailing bf16 cast on the last iter)
    h = jnp.maximum(zb, 0.0)
    img = jnp.tanh(jnp.dot(h.astype(bf16), wg2_ref[...], preferred_element_type=f32) + bg2)
    img_ref[...] = img.astype(img_ref.dtype)


# ------------------------- params & wrapper -------------------------

def make_params(key):
    ks = jax.random.split(key, 6)
    s = 0.05
    f32, bf16 = jnp.float32, jnp.bfloat16

    w_avg = jax.random.normal(ks[0], (W_DIM,), f32) * s
    # w_avg.unsqueeze(0).unsqueeze(0).repeat(1, num_ws, 1) -> (1, num_ws, w_dim) -> flat
    avg_ws = jnp.tile(w_avg[None, None, :], (1, NUM_WS, 1)).reshape(1, WS_DIM)

    # encoder layer 1, split into loop-invariant (input image) and per-iteration
    # (current reconstruction) halves of the channel-concatenated input.
    We1_in = jax.random.normal(ks[1], (CHW, HID_E), f32) * s
    We1_img = jax.random.normal(ks[2], (CHW, HID_E), f32) * s
    be1 = jnp.zeros((1, HID_E), f32)
    We2 = jax.random.normal(ks[3], (HID_E, WS_DIM), f32) * s
    be2 = jnp.zeros((1, WS_DIM), f32)
    # generator
    Wg1 = jax.random.normal(ks[4], (WS_DIM, HID_G), f32) * s
    bg1 = jnp.zeros((1, HID_G), f32)
    Wg2 = jax.random.normal(ks[5], (HID_G, CHW), f32) * s
    bg2 = jnp.zeros((1, CHW), f32)

    # ---- param-only precomputation (hoisted off the kernel's critical path) ----
    # Carried quantity is zb = ws @ Wg1 + bg1; bootstrap value from avg_ws:
    z0 = jnp.dot(avg_ws.astype(bf16), Wg1.astype(bf16), preferred_element_type=f32) + bg1
    # avg_img = G(avg_ws)   (== calc_avg_img())
    avg_img = jnp.tanh(jnp.dot(jnp.maximum(z0, 0.0).astype(bf16), Wg2.astype(bf16),
                               preferred_element_type=f32) + bg2)
    # first-iteration encoder projection of avg_img (constant w.r.t. the input image)
    himg0 = jnp.dot(avg_img.astype(bf16), We1_img.astype(bf16), preferred_element_type=f32)
    # fused residual-path weight/bias: formed in f32, rounded to bf16 once (per review)
    We2Wg1 = jnp.dot(We2, Wg1).astype(bf16)                           # (HID_E, HID_G)
    be2Wg1 = jnp.dot(be2, Wg1)                                        # (1, HID_G)

    return {
        "z0": z0.astype(f32),
        "himg0": himg0.astype(f32),
        "We1_in": We1_in.astype(bf16),
        "We1_img": We1_img.astype(bf16),
        "be1": be1,
        "We2Wg1": We2Wg1,
        "be2Wg1": be2Wg1,
        "Wg2": Wg2.astype(bf16),
        "bg2": bg2,
    }


def restyle_psp_forward(input_img, params):
    """Exact RestylePsp.forward loop semantics, computed in a single fused Pallas kernel."""
    B = input_img.shape[0]
    x_flat = input_img.reshape(B, CHW).astype(jnp.bfloat16)

    # Batch tiling: multiple-of-TILE_M batches get a parallel grid axis (v7x megacore);
    # tiny/odd batches use one full-array block (allowed when block == full dims) -> no pad.
    if B % TILE_M == 0:
        tile_m, grid_m = TILE_M, B // TILE_M
    else:
        tile_m, grid_m = B, 1

    def tiled(shape):    # per-batch-tile arrays
        return pl.BlockSpec(shape, lambda i: (i, 0))

    def shared(shape):   # weights / biases: same block for every batch tile (stay resident)
        return pl.BlockSpec(shape, lambda i: (0, 0))

    img_flat = pl.pallas_call(
        _restyle_fused_kernel,
        out_shape=jax.ShapeDtypeStruct((B, CHW), jnp.float32),
        grid=(grid_m,),
        in_specs=[
            tiled((tile_m, CHW)),                     # x (bf16)
            shared((1, HID_G)),                       # z0  = avg_ws @ Wg1 + bg1
            shared((1, HID_E)),                       # himg0 = G(avg_ws) @ We1_img
            shared((CHW, HID_E)),                     # We1_in
            shared((CHW, HID_E)),                     # We1_img
            shared((1, HID_E)),                       # be1
            shared((HID_E, HID_G)),                   # We2 @ Wg1 (fused)
            shared((1, HID_G)),                       # be2 @ Wg1 (fused)
            shared((HID_G, CHW)),                     # Wg2
            shared((1, CHW)),                         # bg2
        ],
        out_specs=tiled((tile_m, CHW)),
        compiler_params=pltpu.CompilerParams(
            dimension_semantics=("parallel",),        # batch tiles split across v7x's 2 TCs
            vmem_limit_bytes=4 * 1024 * 1024,         # footprint < 2 MiB; keep headroom tight
        ),
    )(x_flat, params["z0"], params["himg0"],
      params["We1_in"], params["We1_img"], params["be1"],
      params["We2Wg1"], params["be2Wg1"],
      params["Wg2"], params["bg2"])

    return img_flat.reshape(B, C, H, W)


# ------------------------- main -------------------------

if __name__ == "__main__":
    key = jax.random.PRNGKey(0)
    k_x, k_p = jax.random.split(key)
    x = jax.random.normal(k_x, (2, C, H, W), jnp.float32)      # NCHW input image
    params = make_params(k_p)

    out = jax.jit(restyle_psp_forward)(x, params)
    out = jax.block_until_ready(out)
    assert out.shape == (2, C, H, W), out.shape
    assert bool(jnp.all(jnp.isfinite(out)))
    print("KERNEL_OK")
</pallas_src>

<mosaic_0001>
module attributes {stable_mosaic.version = 11 : i64} {
  func.func @_restyle_fused_kernel(%arg0: i32, %arg1: memref<2x768xbf16, #tpu.memory_space<vmem>>, %arg2: memref<1x128xf32, #tpu.memory_space<vmem>>, %arg3: memref<1x128xf32, #tpu.memory_space<vmem>>, %arg4: memref<768x128xbf16, #tpu.memory_space<vmem>>, %arg5: memref<768x128xbf16, #tpu.memory_space<vmem>>, %arg6: memref<1x128xf32, #tpu.memory_space<vmem>>, %arg7: memref<128x128xbf16, #tpu.memory_space<vmem>>, %arg8: memref<1x128xf32, #tpu.memory_space<vmem>>, %arg9: memref<128x768xbf16, #tpu.memory_space<vmem>>, %arg10: memref<1x768xf32, #tpu.memory_space<vmem>>, %arg11: memref<2x768xf32, #tpu.memory_space<vmem>>) attributes {dimension_semantics = [#tpu.dimension_semantics<parallel>], iteration_bounds = array<i64: 1>, scalar_prefetch = 0 : i64, scratch_operands = 0 : i64, tpu.core_type = #tpu.core_type<tc>, window_params = [{transform_indices = @transform_0, window_bounds = array<i64: 2, 768>}, {pipeline_mode = #tpu.pipeline_mode<synchronous>, transform_indices = @transform_1, window_bounds = array<i64: 1, 128>}, {pipeline_mode = #tpu.pipeline_mode<synchronous>, transform_indices = @transform_2, window_bounds = array<i64: 1, 128>}, {pipeline_mode = #tpu.pipeline_mode<synchronous>, transform_indices = @transform_3, window_bounds = array<i64: 768, 128>}, {pipeline_mode = #tpu.pipeline_mode<synchronous>, transform_indices = @transform_4, window_bounds = array<i64: 768, 128>}, {pipeline_mode = #tpu.pipeline_mode<synchronous>, transform_indices = @transform_5, window_bounds = array<i64: 1, 128>}, {pipeline_mode = #tpu.pipeline_mode<synchronous>, transform_indices = @transform_6, window_bounds = array<i64: 128, 128>}, {pipeline_mode = #tpu.pipeline_mode<synchronous>, transform_indices = @transform_7, window_bounds = array<i64: 1, 128>}, {pipeline_mode = #tpu.pipeline_mode<synchronous>, transform_indices = @transform_8, window_bounds = array<i64: 128, 768>}, {pipeline_mode = #tpu.pipeline_mode<synchronous>, transform_indices = @transform_9, window_bounds = array<i64: 1, 768>}, {transform_indices = @transform_10, window_bounds = array<i64: 2, 768>}]} {
    %c0 = arith.constant 0 : index
    %c0_0 = arith.constant 0 : index
    %0 = vector.load %arg1[%c0, %c0_0] : memref<2x768xbf16, #tpu.memory_space<vmem>>, vector<2x768xbf16>
    %c0_1 = arith.constant 0 : index
    %c0_2 = arith.constant 0 : index
    %1 = vector.load %arg4[%c0_1, %c0_2] : memref<768x128xbf16, #tpu.memory_space<vmem>>, vector<768x128xbf16>
    %cst = arith.constant dense<0.000000e+00> : vector<2x128xf32>
    %2 = tpu.matmul %0, %1, %cst {dimension_numbers = #tpu.dot_dimension_numbers<[1], [0], [0], [1], [0, 0, 1, 1], [], []>} : vector<2x768xbf16>, vector<768x128xbf16>, vector<2x128xf32> -> vector<2x128xf32>
    %c0_3 = arith.constant 0 : index
    %c0_4 = arith.constant 0 : index
    %3 = vector.load %arg6[%c0_3, %c0_4] : memref<1x128xf32, #tpu.memory_space<vmem>>, vector<1x128xf32>
    %4 = vector.broadcast %3 : vector<1x128xf32> to vector<2x128xf32>
    %5 = arith.addf %2, %4 : vector<2x128xf32>
    %c0_5 = arith.constant 0 : index
    %c0_6 = arith.constant 0 : index
    %6 = vector.load %arg8[%c0_5, %c0_6] : memref<1x128xf32, #tpu.memory_space<vmem>>, vector<1x128xf32>
    %c0_7 = arith.constant 0 : index
    %c0_8 = arith.constant 0 : index
    %7 = vector.load %arg10[%c0_7, %c0_8] : memref<1x768xf32, #tpu.memory_space<vmem>>, vector<1x768xf32>
    %c0_9 = arith.constant 0 : index
    %c0_10 = arith.constant 0 : index
    %8 = vector.load %arg2[%c0_9, %c0_10] : memref<1x128xf32, #tpu.memory_space<vmem>>, vector<1x128xf32>
    %9 = vector.shape_cast %8 : vector<1x128xf32> to vector<1x128xf32>
    %10 = vector.broadcast %9 : vector<1x128xf32> to vector<2x128xf32>
    %c0_11 = arith.constant 0 : index
    %c0_12 = arith.constant 0 : index
    %11 = vector.load %arg3[%c0_11, %c0_12] : memref<1x128xf32, #tpu.memory_space<vmem>>, vector<1x128xf32>
    %12 = vector.broadcast %11 : vector<1x128xf32> to vector<2x128xf32>
    %13 = arith.addf %5, %12 : vector<2x128xf32>
    %cst_13 = arith.constant 0.000000e+00 : f32
    %14 = vector.broadcast %cst_13 : f32 to vector<2x128xf32>
    %15 = arith.maximumf %13, %14 : vector<2x128xf32>
    %16 = arith.truncf %15 : vector<2x128xf32> to vector<2x128xbf16>
    %c0_14 = arith.constant 0 : index
    %c0_15 = arith.constant 0 : index
    %17 = vector.load %arg7[%c0_14, %c0_15] : memref<128x128xbf16, #tpu.memory_space<vmem>>, vector<128x128xbf16>
    %cst_16 = arith.constant dense<0.000000e+00> : vector<2x128xf32>
    %18 = tpu.matmul %16, %17, %cst_16 {dimension_numbers = #tpu.dot_dimension_numbers<[1], [0], [0], [1], [0, 0, 1, 1], [], []>} : vector<2x128xbf16>, vector<128x128xbf16>, vector<2x128xf32> -> vector<2x128xf32>
    %19 = arith.addf %10, %18 : vector<2x128xf32>
    %20 = vector.broadcast %6 : vector<1x128xf32> to vector<2x128xf32>
    %21 = arith.addf %19, %20 : vector<2x128xf32>
    %cst_17 = arith.constant 0.000000e+00 : f32
    %22 = vector.broadcast %cst_17 : f32 to vector<2x128xf32>
    %23 = arith.maximumf %21, %22 : vector<2x128xf32>
    %24 = arith.truncf %23 : vector<2x128xf32> to vector<2x128xbf16>
    %c0_18 = arith.constant 0 : index
    %c0_19 = arith.constant 0 : index
    %25 = vector.load %arg9[%c0_18, %c0_19] : memref<128x768xbf16, #tpu.memory_space<vmem>>, vector<128x768xbf16>
    %cst_20 = arith.constant dense<0.000000e+00> : vector<2x768xf32>
    %26 = tpu.matmul %24, %25, %cst_20 {dimension_numbers = #tpu.dot_dimension_numbers<[1], [0], [0], [1], [0, 0, 1, 1], [], []>} : vector<2x128xbf16>, vector<128x768xbf16>, vector<2x768xf32> -> vector<2x768xf32>
    %27 = vector.broadcast %7 : vector<1x768xf32> to vector<2x768xf32>
    %28 = arith.addf %26, %27 : vector<2x768xf32>
    %29 = math.tanh %28 : vector<2x768xf32>
    %30 = arith.truncf %29 : vector<2x768xf32> to vector<2x768xbf16>
    %c0_21 = arith.constant 0 : index
    %c0_22 = arith.constant 0 : index
    %31 = vector.load %arg5[%c0_21, %c0_22] : memref<768x128xbf16, #tpu.memory_space<vmem>>, vector<768x128xbf16>
    %cst_23 = arith.constant dense<0.000000e+00> : vector<2x128xf32>
    %32 = tpu.matmul %30, %31, %cst_23 {dimension_numbers = #tpu.dot_dimension_numbers<[1], [0], [0], [1], [0, 0, 1, 1], [], []>} : vector<2x768xbf16>, vector<768x128xbf16>, vector<2x128xf32> -> vector<2x128xf32>
    %33 = arith.addf %5, %32 : vector<2x128xf32>
    %cst_24 = arith.constant 0.000000e+00 : f32
    %34 = vector.broadcast %cst_24 : f32 to vector<2x128xf32>
    %35 = arith.maximumf %33, %34 : vector<2x128xf32>
    %36 = arith.truncf %35 : vector<2x128xf32> to vector<2x128xbf16>
    %c0_25 = arith.constant 0 : index
    %c0_26 = arith.constant 0 : index
    %37 = vector.load %arg7[%c0_25, %c0_26] : memref<128x128xbf16, #tpu.memory_space<vmem>>, vector<128x128xbf16>
    %cst_27 = arith.constant dense<0.000000e+00> : vector<2x128xf32>
    %38 = tpu.matmul %36, %37, %cst_27 {dimension_numbers = #tpu.dot_dimension_numbers<[1], [0], [0], [1], [0, 0, 1, 1], [], []>} : vector<2x128xbf16>, vector<128x128xbf16>, vector<2x128xf32> -> vector<2x128xf32>
    %39 = arith.addf %21, %38 : vector<2x128xf32>
    %40 = vector.broadcast %6 : vector<1x128xf32> to vector<2x128xf32>
    %41 = arith.addf %39, %40 : vector<2x128xf32>
    %cst_28 = arith.constant 0.000000e+00 : f32
    %42 = vector.broadcast %cst_28 : f32 to vector<2x128xf32>
    %43 = arith.maximumf %41, %42 : vector<2x128xf32>
    %44 = arith.truncf %43 : vector<2x128xf32> to vector<2x128xbf16>
    %c0_29 = arith.constant 0 : index
    %c0_30 = arith.constant 0 : index
    %45 = vector.load %arg9[%c0_29, %c0_30] : memref<128x768xbf16, #tpu.memory_space<vmem>>, vector<128x768xbf16>
    %cst_31 = arith.constant dense<0.000000e+00> : vector<2x768xf32>
    %46 = tpu.matmul %44, %45, %cst_31 {dimension_numbers = #tpu.dot_dimension_numbers<[1], [0], [0], [1], [0, 0, 1, 1], [], []>} : vector<2x128xbf16>, vector<128x768xbf16>, vector<2x768xf32> -> vector<2x768xf32>
    %47 = vector.broadcast %7 : vector<1x768xf32> to vector<2x768xf32>
    %48 = arith.addf %46, %47 : vector<2x768xf32>
    %49 = math.tanh %48 : vector<2x768xf32>
    %50 = arith.truncf %49 : vector<2x768xf32> to vector<2x768xbf16>
    %c0_32 = arith.constant 0 : index
    %c0_33 = arith.constant 0 : index
    %51 = vector.load %arg5[%c0_32, %c0_33] : memref<768x128xbf16, #tpu.memory_space<vmem>>, vector<768x128xbf16>
    %cst_34 = arith.constant dense<0.000000e+00> : vector<2x128xf32>
    %52 = tpu.matmul %50, %51, %cst_34 {dimension_numbers = #tpu.dot_dimension_numbers<[1], [0], [0], [1], [0, 0, 1, 1], [], []>} : vector<2x768xbf16>, vector<768x128xbf16>, vector<2x128xf32> -> vector<2x128xf32>
    %53 = arith.addf %5, %52 : vector<2x128xf32>
    %cst_35 = arith.constant 0.000000e+00 : f32
    %54 = vector.broadcast %cst_35 : f32 to vector<2x128xf32>
    %55 = arith.maximumf %53, %54 : vector<2x128xf32>
    %56 = arith.truncf %55 : vector<2x128xf32> to vector<2x128xbf16>
    %c0_36 = arith.constant 0 : index
    %c0_37 = arith.constant 0 : index
    %57 = vector.load %arg7[%c0_36, %c0_37] : memref<128x128xbf16, #tpu.memory_space<vmem>>, vector<128x128xbf16>
    %cst_38 = arith.constant dense<0.000000e+00> : vector<2x128xf32>
    %58 = tpu.matmul %56, %57, %cst_38 {dimension_numbers = #tpu.dot_dimension_numbers<[1], [0], [0], [1], [0, 0, 1, 1], [], []>} : vector<2x128xbf16>, vector<128x128xbf16>, vector<2x128xf32> -> vector<2x128xf32>
    %59 = arith.addf %41, %58 : vector<2x128xf32>
    %60 = vector.broadcast %6 : vector<1x128xf32> to vector<2x128xf32>
    %61 = arith.addf %59, %60 : vector<2x128xf32>
    %cst_39 = arith.constant 0.000000e+00 : f32
    %62 = vector.broadcast %cst_39 : f32 to vector<2x128xf32>
    %63 = arith.maximumf %61, %62 : vector<2x128xf32>
    %64 = arith.truncf %63 : vector<2x128xf32> to vector<2x128xbf16>
    %c0_40 = arith.constant 0 : index
    %c0_41 = arith.constant 0 : index
    %65 = vector.load %arg9[%c0_40, %c0_41] : memref<128x768xbf16, #tpu.memory_space<vmem>>, vector<128x768xbf16>
    %cst_42 = arith.constant dense<0.000000e+00> : vector<2x768xf32>
    %66 = tpu.matmul %64, %65, %cst_42 {dimension_numbers = #tpu.dot_dimension_numbers<[1], [0], [0], [1], [0, 0, 1, 1], [], []>} : vector<2x128xbf16>, vector<128x768xbf16>, vector<2x768xf32> -> vector<2x768xf32>
    %67 = vector.broadcast %7 : vector<1x768xf32> to vector<2x768xf32>
    %68 = arith.addf %66, %67 : vector<2x768xf32>
    %69 = math.tanh %68 : vector<2x768xf32>
    %70 = arith.truncf %69 : vector<2x768xf32> to vector<2x768xbf16>
    %c0_43 = arith.constant 0 : index
    %c0_44 = arith.constant 0 : index
    %71 = vector.load %arg5[%c0_43, %c0_44] : memref<768x128xbf16, #tpu.memory_space<vmem>>, vector<768x128xbf16>
    %cst_45 = arith.constant dense<0.000000e+00> : vector<2x128xf32>
    %72 = tpu.matmul %70, %71, %cst_45 {dimension_numbers = #tpu.dot_dimension_numbers<[1], [0], [0], [1], [0, 0, 1, 1], [], []>} : vector<2x768xbf16>, vector<768x128xbf16>, vector<2x128xf32> -> vector<2x128xf32>
    %73 = arith.addf %5, %72 : vector<2x128xf32>
    %cst_46 = arith.constant 0.000000e+00 : f32
    %74 = vector.broadcast %cst_46 : f32 to vector<2x128xf32>
    %75 = arith.maximumf %73, %74 : vector<2x128xf32>
    %76 = arith.truncf %75 : vector<2x128xf32> to vector<2x128xbf16>
    %c0_47 = arith.constant 0 : index
    %c0_48 = arith.constant 0 : index
    %77 = vector.load %arg7[%c0_47, %c0_48] : memref<128x128xbf16, #tpu.memory_space<vmem>>, vector<128x128xbf16>
    %cst_49 = arith.constant dense<0.000000e+00> : vector<2x128xf32>
    %78 = tpu.matmul %76, %77, %cst_49 {dimension_numbers = #tpu.dot_dimension_numbers<[1], [0], [0], [1], [0, 0, 1, 1], [], []>} : vector<2x128xbf16>, vector<128x128xbf16>, vector<2x128xf32> -> vector<2x128xf32>
    %79 = arith.addf %61, %78 : vector<2x128xf32>
    %80 = vector.broadcast %6 : vector<1x128xf32> to vector<2x128xf32>
    %81 = arith.addf %79, %80 : vector<2x128xf32>
    %cst_50 = arith.constant 0.000000e+00 : f32
    %82 = vector.broadcast %cst_50 : f32 to vector<2x128xf32>
    %83 = arith.maximumf %81, %82 : vector<2x128xf32>
    %84 = arith.truncf %83 : vector<2x128xf32> to vector<2x128xbf16>
    %c0_51 = arith.constant 0 : index
    %c0_52 = arith.constant 0 : index
    %85 = vector.load %arg9[%c0_51, %c0_52] : memref<128x768xbf16, #tpu.memory_space<vmem>>, vector<128x768xbf16>
    %cst_53 = arith.constant dense<0.000000e+00> : vector<2x768xf32>
    %86 = tpu.matmul %84, %85, %cst_53 {dimension_numbers = #tpu.dot_dimension_numbers<[1], [0], [0], [1], [0, 0, 1, 1], [], []>} : vector<2x128xbf16>, vector<128x768xbf16>, vector<2x768xf32> -> vector<2x768xf32>
    %87 = vector.broadcast %7 : vector<1x768xf32> to vector<2x768xf32>
    %88 = arith.addf %86, %87 : vector<2x768xf32>
    %89 = math.tanh %88 : vector<2x768xf32>
    %90 = arith.truncf %89 : vector<2x768xf32> to vector<2x768xbf16>
    %c0_54 = arith.constant 0 : index
    %c0_55 = arith.constant 0 : index
    %91 = vector.load %arg5[%c0_54, %c0_55] : memref<768x128xbf16, #tpu.memory_space<vmem>>, vector<768x128xbf16>
    %cst_56 = arith.constant dense<0.000000e+00> : vector<2x128xf32>
    %92 = tpu.matmul %90, %91, %cst_56 {dimension_numbers = #tpu.dot_dimension_numbers<[1], [0], [0], [1], [0, 0, 1, 1], [], []>} : vector<2x768xbf16>, vector<768x128xbf16>, vector<2x128xf32> -> vector<2x128xf32>
    %93 = arith.addf %5, %92 : vector<2x128xf32>
    %cst_57 = arith.constant 0.000000e+00 : f32
    %94 = vector.broadcast %cst_57 : f32 to vector<2x128xf32>
    %95 = arith.maximumf %93, %94 : vector<2x128xf32>
    %96 = arith.truncf %95 : vector<2x128xf32> to vector<2x128xbf16>
    %c0_58 = arith.constant 0 : index
    %c0_59 = arith.constant 0 : index
    %97 = vector.load %arg7[%c0_58, %c0_59] : memref<128x128xbf16, #tpu.memory_space<vmem>>, vector<128x128xbf16>
    %cst_60 = arith.constant dense<0.000000e+00> : vector<2x128xf32>
    %98 = tpu.matmul %96, %97, %cst_60 {dimension_numbers = #tpu.dot_dimension_numbers<[1], [0], [0], [1], [0, 0, 1, 1], [], []>} : vector<2x128xbf16>, vector<128x128xbf16>, vector<2x128xf32> -> vector<2x128xf32>
    %99 = arith.addf %81, %98 : vector<2x128xf32>
    %100 = vector.broadcast %6 : vector<1x128xf32> to vector<2x128xf32>
    %101 = arith.addf %99, %100 : vector<2x128xf32>
    %cst_61 = arith.constant 0.000000e+00 : f32
    %102 = vector.broadcast %cst_61 : f32 to vector<2x128xf32>
    %103 = arith.maximumf %101, %102 : vector<2x128xf32>
    %104 = arith.truncf %103 : vector<2x128xf32> to vector<2x128xbf16>
    %c0_62 = arith.constant 0 : index
    %c0_63 = arith.constant 0 : index
    %105 = vector.load %arg9[%c0_62, %c0_63] : memref<128x768xbf16, #tpu.memory_space<vmem>>, vector<128x768xbf16>
    %cst_64 = arith.constant dense<0.000000e+00> : vector<2x768xf32>
    %106 = tpu.matmul %104, %105, %cst_64 {dimension_numbers = #tpu.dot_dimension_numbers<[1], [0], [0], [1], [0, 0, 1, 1], [], []>} : vector<2x128xbf16>, vector<128x768xbf16>, vector<2x768xf32> -> vector<2x768xf32>
    %107 = vector.broadcast %7 : vector<1x768xf32> to vector<2x768xf32>
    %108 = arith.addf %106, %107 : vector<2x768xf32>
    %109 = math.tanh %108 : vector<2x768xf32>
    %c0_65 = arith.constant 0 : index
    %c0_66 = arith.constant 0 : index
    %110 = vector.load %arg11[%c0_65, %c0_66] : memref<2x768xf32, #tpu.memory_space<vmem>>, vector<2x768xf32>
    tpu.vector_store %arg11[%c0_65, %c0_66], %109 {strides = array<i32>} : memref<2x768xf32, #tpu.memory_space<vmem>>, vector<2x768xf32>,
    return
  }
  func.func @transform_0(%arg0: i32) -> (i32, i32) {
    %c0_i32 = arith.constant 0 : i32
    %c0_i32_0 = arith.constant 0 : i32
    return %arg0, %c0_i32 : i32, i32
  }
  func.func @transform_1(%arg0: i32) -> (i32, i32) {
    %c0_i32 = arith.constant 0 : i32
    %c0_i32_0 = arith.constant 0 : i32
    %c0_i32_1 = arith.constant 0 : i32
    return %c0_i32, %c0_i32_0 : i32, i32
  }
  func.func @transform_2(%arg0: i32) -> (i32, i32) {
    %c0_i32 = arith.constant 0 : i32
    %c0_i32_0 = arith.constant 0 : i32
    %c0_i32_1 = arith.constant 0 : i32
    return %c0_i32, %c0_i32_0 : i32, i32
  }
  func.func @transform_3(%arg0: i32) -> (i32, i32) {
    %c0_i32 = arith.constant 0 : i32
    %c0_i32_0 = arith.constant 0 : i32
    %c0_i32_1 = arith.constant 0 : i32
    return %c0_i32, %c0_i32_0 : i32, i32
  }
  func.func @transform_4(%arg0: i32) -> (i32, i32) {
    %c0_i32 = arith.constant 0 : i32
    %c0_i32_0 = arith.constant 0 : i32
    %c0_i32_1 = arith.constant 0 : i32
    return %c0_i32, %c0_i32_0 : i32, i32
  }
  func.func @transform_5(%arg0: i32) -> (i32, i32) {
    %c0_i32 = arith.constant 0 : i32
    %c0_i32_0 = arith.constant 0 : i32
    %c0_i32_1 = arith.constant 0 : i32
    return %c0_i32, %c0_i32_0 : i32, i32
  }
  func.func @transform_6(%arg0: i32) -> (i32, i32) {
    %c0_i32 = arith.constant 0 : i32
    %c0_i32_0 = arith.constant 0 : i32
    %c0_i32_1 = arith.constant 0 : i32
    return %c0_i32, %c0_i32_0 : i32, i32
  }
  func.func @transform_7(%arg0: i32) -> (i32, i32) {
    %c0_i32 = arith.constant 0 : i32
    %c0_i32_0 = arith.constant 0 : i32
    %c0_i32_1 = arith.constant 0 : i32
    return %c0_i32, %c0_i32_0 : i32, i32
  }
  func.func @transform_8(%arg0: i32) -> (i32, i32) {
    %c0_i32 = arith.constant 0 : i32
    %c0_i32_0 = arith.constant 0 : i32
    %c0_i32_1 = arith.constant 0 : i32
    return %c0_i32, %c0_i32_0 : i32, i32
  }
  func.func @transform_9(%arg0: i32) -> (i32, i32) {
    %c0_i32 = arith.constant 0 : i32
    %c0_i32_0 = arith.constant 0 : i32
    %c0_i32_1 = arith.constant 0 : i32
    return %c0_i32, %c0_i32_0 : i32, i32
  }
  func.func @transform_10(%arg0: i32) -> (i32, i32) {
    %c0_i32 = arith.constant 0 : i32
    %c0_i32_0 = arith.constant 0 : i32
    return %arg0, %c0_i32 : i32, i32
  }
}

</mosaic_0001>

<llo_original>
// kernel: restyle_psp_forward.1
$region0: #{restyle_psp_forward.1}
  #allocation0 [shape = 'u32[]', space=smem, size = 0x4, offset = 0x4, fixed_abs, tag = 'smem constant byte address 0x4 - core index']
  #allocation1 [shape = 'u32[144,128]{1,0:T(1,128)}', space=vmem, size = 0x12000, scoped, tag = 'internal scratch']
  %s0 = inlined_call_operand.vmem [shape: bf16[2,768], index: 0, kind: input, shape index: {}]
  %s1 = inlined_call_operand.vmem [shape: f32[1,128], index: 1, kind: input, shape index: {}]
  %s2 = inlined_call_operand.vmem [shape: f32[1,128], index: 2, kind: input, shape index: {}]
  %s3 = inlined_call_operand.hbm [shape: bf16[768,128], index: 3, kind: input, shape index: {}]
  %s4 = inlined_call_operand.hbm [shape: bf16[768,128], index: 4, kind: input, shape index: {}]
  %s5 = inlined_call_operand.vmem [shape: f32[1,128], index: 5, kind: input, shape index: {}]
  %s6 = inlined_call_operand.vmem [shape: bf16[128,128], index: 6, kind: input, shape index: {}]
  %s7 = inlined_call_operand.vmem [shape: f32[1,128], index: 7, kind: input, shape index: {}]
  %s8 = inlined_call_operand.hbm [shape: bf16[128,768], index: 8, kind: input, shape index: {}]
  %s9 = inlined_call_operand.vmem [shape: f32[1,768], index: 9, kind: input, shape index: {}]
  %s10 = inlined_call_operand.vmem [shape: f32[2,768], index: 10, kind: output, shape index: {}]
  %s11 = sld [smem:[#allocation0]]
  $region62: #{restyle_psp_forward.1} parent=0
    _
  %s13 = ssub.s32 1, %s11
  %s14 = scalar_select 0, %s13, %s11
  $region1: #{restyle_psp_forward.1} parent=0
    #allocation2 [shape = 'u8[196608]{0}', space=vmem, size = 0x30000, scoped, tag = 'input window, operand 3, single buffered']
    #allocation3 [shape = 's32[1]{0}', space=sflag, size = 0x4, scoped, tag = 'scoped memory for restyle_psp_forward.1']
    #allocation4 [shape = 'u8[196608]{0}', space=vmem, size = 0x30000, scoped, tag = 'input window, operand 4, single buffered']
    #allocation5 [shape = 's32[1]{0}', space=sflag, size = 0x4, scoped, tag = 'scoped memory for restyle_psp_forward.1']
    #allocation6 [shape = 'u8[196608]{0}', space=vmem, size = 0x30000, scoped, tag = 'input window, operand 8, single buffered']
    %15 = vsyncpa [#allocation3], 0
    %16 = vsyncpa [#allocation5], 0
    // Predicated region
    $region2: #{restyle_psp_forward.1} parent=1 // pred_check
      _
    $region3: #{restyle_psp_forward.1} parent=1 // pred_check_branch
      %18 = sbr.rel (0) target = $region5
    $region4: #{restyle_psp_forward.1} parent=1 // pred_region
      _
    $region5: #{restyle_psp_forward.1} parent=1 // pred_fallthru
      _
    // Predicated region
    $region6: #{restyle_psp_forward.1} parent=1 // pred_check
      _
    $region7: #{restyle_psp_forward.1} parent=1 // pred_check_branch
      %20 = sbr.rel (0) target = $region9
    $region8: #{restyle_psp_forward.1} parent=1 // pred_region
      _
    $region9: #{restyle_psp_forward.1} parent=1 // pred_fallthru
      _
    // Predicated region
    $region10: #{restyle_psp_forward.1} parent=1 // pred_check
      _
    $region11: #{restyle_psp_forward.1} parent=1 // pred_check_branch
      %22 = sbr.rel (0) target = $region13
    $region12: #{restyle_psp_forward.1} parent=1 // pred_region
      _
    $region13: #{restyle_psp_forward.1} parent=1 // pred_fallthru
      _
    // Predicated region
    $region14: #{restyle_psp_forward.1} parent=1 // pred_check
      _
    $region15: #{restyle_psp_forward.1} parent=1 // pred_check_branch
      %24 = sbr.rel (0) target = $region17
    $region16: #{restyle_psp_forward.1} parent=1 // pred_region
      %s26 = ssub.s32 6144, 6144
      %27 = vsyncadd [#allocation3], %s26
      %s28 = sshll.u32 [#allocation2], 4
      %s29 = int_to_ptr.vmem [resolvable:$true] %s28
      %34 = dma.hbm_to_vmem [thread:$0]  %s3, 6144, %s29, [#allocation3], 64, 64, 4
    $region17: #{restyle_psp_forward.1} parent=1 // pred_fallthru
      _
    // Predicated region
    $region18: #{restyle_psp_forward.1} parent=1 // pred_check
      _
    $region19: #{restyle_psp_forward.1} parent=1 // pred_check_branch
      %36 = sbr.rel (0) target = $region21
    $region20: #{restyle_psp_forward.1} parent=1 // pred_region
      %s38 = ssub.s32 6144, 6144
      %39 = vsyncadd [#allocation5], %s38
      %s40 = sshll.u32 [#allocation4], 4
      %s41 = int_to_ptr.vmem [resolvable:$true] %s40
      %46 = dma.hbm_to_vmem [thread:$0]  %s4, 6144, %s41, [#allocation5], 64, 64, 4
    $region21: #{restyle_psp_forward.1} parent=1 // pred_fallthru
      _
    // Predicated region
    $region22: #{restyle_psp_forward.1} parent=1 // pred_check
      _
    $region23: #{restyle_psp_forward.1} parent=1 // pred_check_branch
      %48 = sbr.rel (0) target = $region25
    $region24: #{restyle_psp_forward.1} parent=1 // pred_region
      _
    $region25: #{restyle_psp_forward.1} parent=1 // pred_fallthru
      _
    // Predicated region
    $region26: #{restyle_psp_forward.1} parent=1 // pred_check
      _
    $region27: #{restyle_psp_forward.1} parent=1 // pred_check_branch
      %50 = sbr.rel (0) target = $region29
    $region28: #{restyle_psp_forward.1} parent=1 // pred_region
      _
    $region29: #{restyle_psp_forward.1} parent=1 // pred_fallthru
      _
    // Predicated region
    $region30: #{restyle_psp_forward.1} parent=1 // pred_check
      _
    $region31: #{restyle_psp_forward.1} parent=1 // pred_check_branch
      %52 = sbr.rel (0) target = $region33
    $region32: #{restyle_psp_forward.1} parent=1 // pred_region
      _
    $region33: #{restyle_psp_forward.1} parent=1 // pred_fallthru
      _
    // Predicated region
    $region34: #{restyle_psp_forward.1} parent=1 // pred_check
      _
    $region35: #{restyle_psp_forward.1} parent=1 // pred_check_branch
      %54 = sbr.rel (0) target = $region37
    $region36: #{restyle_psp_forward.1} parent=1 // pred_region
      %s56 = ssub.s32 6144, 6144
      %57 = vsyncadd [#allocation5], %s56
      %s58 = sshll.u32 [#allocation6], 4
      %s59 = int_to_ptr.vmem [resolvable:$true] %s58
      %64 = dma.hbm_to_vmem [thread:$0]  %s8, 6144, %s59, [#allocation5], 384, 384, 24
    $region37: #{restyle_psp_forward.1} parent=1 // pred_fallthru
      _
    // Predicated region
    $region38: #{restyle_psp_forward.1} parent=1 // pred_check
      _
    $region39: #{restyle_psp_forward.1} parent=1 // pred_check_branch
      %66 = sbr.rel (0) target = $region41
    $region40: #{restyle_psp_forward.1} parent=1 // pred_region
      _
    $region41: #{restyle_psp_forward.1} parent=1 // pred_fallthru
      _
    // Predicated region
    $region42: #{restyle_psp_forward.1} parent=1 // pred_check
      _
    $region43: #{restyle_psp_forward.1} parent=1 // pred_check_branch
      %68 = sbr.rel (0) target = $region45
    $region44: #{restyle_psp_forward.1} parent=1 // pred_region
      %69 = dma.done [#allocation3], 6144
    $region45: #{restyle_psp_forward.1} parent=1 // pred_fallthru
      _
    // Predicated region
    $region46: #{restyle_psp_forward.1} parent=1 // pred_check
      _
    $region47: #{restyle_psp_forward.1} parent=1 // pred_check_branch
      %71 = sbr.rel (0) target = $region49
    $region48: #{restyle_psp_forward.1} parent=1 // pred_region
      %72 = dma.done [#allocation5], 6144
    $region49: #{restyle_psp_forward.1} parent=1 // pred_fallthru
      _
    // Predicated region
    $region50: #{restyle_psp_forward.1} parent=1 // pred_check
      _
    $region51: #{restyle_psp_forward.1} parent=1 // pred_check_branch
      %74 = sbr.rel (0) target = $region53
    $region52: #{restyle_psp_forward.1} parent=1 // pred_region
      %75 = dma.done [#allocation5], 6144
    $region53: #{restyle_psp_forward.1} parent=1 // pred_fallthru
      _
    %v77 = vld [vmem:[%s0] sm:$0x3f]
    %v78 = vld [vmem:[#allocation2] sm:$0xf]
    %v79 = vld [vmem:[#allocation2 + $0x4] sm:$0xf]
    %v80 = vld [vmem:[#allocation2 + $0x8] sm:$0xf]
    %v81 = vld [vmem:[#allocation2 + $0xc] sm:$0xf]
    %v82 = vld [vmem:[#allocation2 + $0x10] sm:$0xf]
    %v83 = vld [vmem:[#allocation2 + $0x14] sm:$0xf]
    %v84 = vld [vmem:[#allocation2 + $0x18] sm:$0xf]
    %v85 = vld [vmem:[#allocation2 + $0x1c] sm:$0xf]
    %v86 = vld [vmem:[#allocation2 + $0x20] sm:$0xf]
    %v87 = vld [vmem:[#allocation2 + $0x24] sm:$0xf]
    %v88 = vld [vmem:[#allocation2 + $0x28] sm:$0xf]
    %v89 = vld [vmem:[#allocation2 + $0x2c] sm:$0xf]
    %v90 = vld [vmem:[#allocation2 + $0x30] sm:$0xf]
    %v91 = vld [vmem:[#allocation2 + $0x34] sm:$0xf]
    %v92 = vld [vmem:[#allocation2 + $0x38] sm:$0xf]
    %v93 = vld [vmem:[#allocation2 + $0x3c] sm:$0xf]
    %v94 = vld [vmem:[#allocation2 + $0x40] sm:$0xf]
    %v95 = vld [vmem:[#allocation2 + $0x44] sm:$0xf]
    %v96 = vld [vmem:[#allocation2 + $0x48] sm:$0xf]
    %v97 = vld [vmem:[#allocation2 + $0x4c] sm:$0xf]
    %v98 = vld [vmem:[#allocation2 + $0x50] sm:$0xf]
    %v99 = vld [vmem:[#allocation2 + $0x54] sm:$0xf]
    %v100 = vld [vmem:[#allocation2 + $0x58] sm:$0xf]
    %v101 = vld [vmem:[#allocation2 + $0x5c] sm:$0xf]
    %v102 = vld [vmem:[#allocation2 + $0x60] sm:$0xf]
    %v103 = vld [vmem:[#allocation2 + $0x64] sm:$0xf]
    %v104 = vld [vmem:[#allocation2 + $0x68] sm:$0xf]
    %v105 = vld [vmem:[#allocation2 + $0x6c] sm:$0xf]
    %v106 = vld [vmem:[#allocation2 + $0x70] sm:$0xf]
    %v107 = vld [vmem:[#allocation2 + $0x74] sm:$0xf]
    %v108 = vld [vmem:[#allocation2 + $0x78] sm:$0xf]
    %v109 = vld [vmem:[#allocation2 + $0x7c] sm:$0xf]
    %v110 = vld [vmem:[#allocation2 + $0x80] sm:$0xf]
    %v111 = vld [vmem:[#allocation2 + $0x84] sm:$0xf]
    %v112 = vld [vmem:[#allocation2 + $0x88] sm:$0xf]
    %v113 = vld [vmem:[#allocation2 + $0x8c] sm:$0xf]
    %v114 = vld [vmem:[#allocation2 + $0x90] sm:$0xf]
    %v115 = vld [vmem:[#allocation2 + $0x94] sm:$0xf]
    %v116 = vld [vmem:[#allocation2 + $0x98] sm:$0xf]
    %v117 = vld [vmem:[#allocation2 + $0x9c] sm:$0xf]
    %v118 = vld [vmem:[#allocation2 + $0xa0] sm:$0xf]
    %v119 = vld [vmem:[#allocation2 + $0xa4] sm:$0xf]
    %v120 = vld [vmem:[#allocation2 + $0xa8] sm:$0xf]
    %v121 = vld [vmem:[#allocation2 + $0xac] sm:$0xf]
    %v122 = vld [vmem:[#allocation2 + $0xb0] sm:$0xf]
    %v123 = vld [vmem:[#allocation2 + $0xb4] sm:$0xf]
    %v124 = vld [vmem:[#allocation2 + $0xb8] sm:$0xf]
    %v125 = vld [vmem:[#allocation2 + $0xbc] sm:$0xf]
    %v126 = vld [vmem:[#allocation2 + $0xc0] sm:$0xf]
    %v127 = vld [vmem:[#allocation2 + $0xc4] sm:$0xf]
    %v128 = vld [vmem:[#allocation2 + $0xc8] sm:$0xf]
    %v129 = vld [vmem:[#allocation2 + $0xcc] sm:$0xf]
    %v130 = vld [vmem:[#allocation2 + $0xd0] sm:$0xf]
    %v131 = vld [vmem:[#allocation2 + $0xd4] sm:$0xf]
    %v132 = vld [vmem:[#allocation2 + $0xd8] sm:$0xf]
    %v133 = vld [vmem:[#allocation2 + $0xdc] sm:$0xf]
    %v134 = vld [vmem:[#allocation2 + $0xe0] sm:$0xf]
    %v135 = vld [vmem:[#allocation2 + $0xe4] sm:$0xf]
    %v136 = vld [vmem:[#allocation2 + $0xe8] sm:$0xf]
    %v137 = vld [vmem:[#allocation2 + $0xec] sm:$0xf]
    %v138 = vld [vmem:[#allocation2 + $0xf0] sm:$0xf]
    %v139 = vld [vmem:[#allocation2 + $0xf4] sm:$0xf]
    %v140 = vld [vmem:[#allocation2 + $0xf8] sm:$0xf]
    %v141 = vld [vmem:[#allocation2 + $0xfc] sm:$0xf]
    %v142 = vld [vmem:[#allocation2 + $0x100] sm:$0xf]
    %v143 = vld [vmem:[#allocation2 + $0x104] sm:$0xf]
    %v144 = vld [vmem:[#allocation2 + $0x108] sm:$0xf]
    %v145 = vld [vmem:[#allocation2 + $0x10c] sm:$0xf]
    %v146 = vld [vmem:[#allocation2 + $0x110] sm:$0xf]
    %v147 = vld [vmem:[#allocation2 + $0x114] sm:$0xf]
    %v148 = vld [vmem:[#allocation2 + $0x118] sm:$0xf]
    %v149 = vld [vmem:[#allocation2 + $0x11c] sm:$0xf]
    %v150 = vld [vmem:[#allocation2 + $0x120] sm:$0xf]
    %v151 = vld [vmem:[#allocation2 + $0x124] sm:$0xf]
    %v152 = vld [vmem:[#allocation2 + $0x128] sm:$0xf]
    %v153 = vld [vmem:[#allocation2 + $0x12c] sm:$0xf]
    %v154 = vld [vmem:[#allocation2 + $0x130] sm:$0xf]
    %v155 = vld [vmem:[#allocation2 + $0x134] sm:$0xf]
    %v156 = vld [vmem:[#allocation2 + $0x138] sm:$0xf]
    %v157 = vld [vmem:[#allocation2 + $0x13c] sm:$0xf]
    %v158 = vld [vmem:[#allocation2 + $0x140] sm:$0xf]
    %v159 = vld [vmem:[#allocation2 + $0x144] sm:$0xf]
    %v160 = vld [vmem:[#allocation2 + $0x148] sm:$0xf]
    %v161 = vld [vmem:[#allocation2 + $0x14c] sm:$0xf]
    %v162 = vld [vmem:[#allocation2 + $0x150] sm:$0xf]
    %v163 = vld [vmem:[#allocation2 + $0x154] sm:$0xf]
    %v164 = vld [vmem:[#allocation2 + $0x158] sm:$0xf]
    %v165 = vld [vmem:[#allocation2 + $0x15c] sm:$0xf]
    %v166 = vld [vmem:[#allocation2 + $0x160] sm:$0xf]
    %v167 = vld [vmem:[#allocation2 + $0x164] sm:$0xf]
    %v168 = vld [vmem:[#allocation2 + $0x168] sm:$0xf]
    %v169 = vld [vmem:[#allocation2 + $0x16c] sm:$0xf]
    %v170 = vld [vmem:[#allocation2 + $0x170] sm:$0xf]
    %v171 = vld [vmem:[#allocation2 + $0x174] sm:$0xf]
    %v172 = vld [vmem:[#allocation2 + $0x178] sm:$0xf]
    %v173 = vld [vmem:[#allocation2 + $0x17c] sm:$0xf]
    %v174 = vld [vmem:[%s5] sm:$0x1]
    %v176 = vlaneseq
    %v177 = vshrl.u32 %v176, 7
    %v178 = vsub.s32 0, %v177
    %v179 = vrot.slane %v174, %v178
    %v182 = vcombine.high %v77, %v77
    %v184 = vunpack.c.l.s4 1966171168
    %v185 = vunpack.c.0.s8 %v184
    %v186 = vlaneseq
    %v187 = vshrl.u32 %v186, 7
    %v188 = vsub.s32 %v185, %v187
    %v189 = vrot.slane %v77, %v188
    %v191 = vunpack.c.l.s4 1966171168
    %v192 = vunpack.c.0.s8 %v191
    %v193 = vlaneseq
    %v194 = vshrl.u32 %v193, 7
    %v195 = vsub.s32 %v192, %v194
    %v196 = vrot.slane %v182, %v195
    %v197 = vcombine.high %v189, %v189
    %v198 = vcombine.high %v196, %v196
    %v200 = vunpack.c.l.s4 1966171168
    %v201 = vunpack.c.0.s8 %v200
    %v202 = vlaneseq
    %v203 = vshrl.u32 %v202, 7
    %v204 = vsub.s32 %v201, %v203
    %v205 = vrot.slane %v189, %v204
    %v207 = vunpack.c.l.s4 1966171168
    %v208 = vunpack.c.0.s8 %v207
    %v209 = vlaneseq
    %v210 = vshrl.u32 %v209, 7
    %v211 = vsub.s32 %v208, %v210
    %v212 = vrot.slane %v196, %v211
    %v214 = vunpack.c.l.s4 1966171168
    %v215 = vunpack.c.0.s8 %v214
    %v216 = vlaneseq
    %v217 = vshrl.u32 %v216, 7
    %v218 = vsub.s32 %v215, %v217
    %v219 = vrot.slane %v197, %v218
    %v221 = vunpack.c.l.s4 1966171168
    %v222 = vunpack.c.0.s8 %v221
    %v223 = vlaneseq
    %v224 = vshrl.u32 %v223, 7
    %v225 = vsub.s32 %v222, %v224
    %v226 = vrot.slane %v198, %v225
    %v227 = vcombine.high %v205, %v205
    %v228 = vcombine.high %v219, %v219
    %v331 = vunpack.c.l.b16 %v78
    %v332 = vunpack.c.l.b16 %v79
    %v333 = vunpack.c.l.b16 %v80
    %v334 = vunpack.c.l.b16 %v81
    %v335 = vunpack.c.l.b16 %v82
    %v336 = vunpack.c.l.b16 %v83
    %v337 = vunpack.c.l.b16 %v84
    %v338 = vunpack.c.l.b16 %v85
    %v339 = vunpack.c.l.b16 %v86
    %v340 = vunpack.c.l.b16 %v87
    %v341 = vunpack.c.l.b16 %v88
    %v342 = vunpack.c.l.b16 %v89
    %v343 = vunpack.c.l.b16 %v90
    %v344 = vunpack.c.l.b16 %v91
    %v345 = vunpack.c.l.b16 %v92
    %v346 = vunpack.c.l.b16 %v93
    %v347 = vunpack.c.l.b16 %v94
    %v348 = vunpack.c.l.b16 %v95
    %v349 = vunpack.c.l.b16 %v96
    %v350 = vunpack.c.l.b16 %v97
    %v351 = vunpack.c.l.b16 %v98
    %v352 = vunpack.c.l.b16 %v99
    %v353 = vunpack.c.l.b16 %v100
    %v354 = vunpack.c.l.b16 %v101
    %v355 = vunpack.c.l.b16 %v102
    %v356 = vunpack.c.l.b16 %v103
    %v357 = vunpack.c.l.b16 %v104
    %v358 = vunpack.c.l.b16 %v105
    %v359 = vunpack.c.l.b16 %v106
    %v360 = vunpack.c.l.b16 %v107
    %v361 = vunpack.c.l.b16 %v108
    %v362 = vunpack.c.l.b16 %v109
    %v363 = vunpack.c.l.b16 %v110
    %v364 = vunpack.c.l.b16 %v111
    %v365 = vunpack.c.l.b16 %v112
    %v366 = vunpack.c.l.b16 %v113
    %v367 = vunpack.c.l.b16 %v114
    %v368 = vunpack.c.l.b16 %v115
    %v369 = vunpack.c.l.b16 %v116
    %v370 = vunpack.c.l.b16 %v117
    %v371 = vunpack.c.l.b16 %v118
    %v372 = vunpack.c.l.b16 %v119
    %v373 = vunpack.c.l.b16 %v120
    %v374 = vunpack.c.l.b16 %v121
    %v375 = vunpack.c.l.b16 %v122
    %v376 = vunpack.c.l.b16 %v123
    %v377 = vunpack.c.l.b16 %v124
    %v378 = vunpack.c.l.b16 %v125
    %v379 = vunpack.c.l.b16 %v126
    %v380 = vunpack.c.l.b16 %v127
    %v381 = vunpack.c.l.b16 %v128
    %v382 = vunpack.c.l.b16 %v129
    %v383 = vunpack.c.l.b16 %v130
    %v384 = vunpack.c.l.b16 %v131
    %v385 = vunpack.c.l.b16 %v132
    %v386 = vunpack.c.l.b16 %v133
    %v387 = vunpack.c.l.b16 %v134
    %v388 = vunpack.c.l.b16 %v135
    %v389 = vunpack.c.l.b16 %v136
    %v390 = vunpack.c.l.b16 %v137
    %v391 = vunpack.c.l.b16 %v138
    %v392 = vunpack.c.l.b16 %v139
    %v393 = vunpack.c.l.b16 %v140
    %v394 = vunpack.c.l.b16 %v141
    %v395 = vunpack.c.l.b16 %v142
    %v396 = vunpack.c.l.b16 %v143
    %v397 = vunpack.c.l.b16 %v144
    %v398 = vunpack.c.l.b16 %v145
    %v399 = vunpack.c.l.b16 %v146
    %v400 = vunpack.c.l.b16 %v147
    %v401 = vunpack.c.l.b16 %v148
    %v402 = vunpack.c.l.b16 %v149
    %v403 = vunpack.c.l.b16 %v150
    %v404 = vunpack.c.l.b16 %v151
    %v405 = vunpack.c.l.b16 %v152
    %v406 = vunpack.c.l.b16 %v153
    %v407 = vunpack.c.l.b16 %v154
    %v408 = vunpack.c.l.b16 %v155
    %v409 = vunpack.c.l.b16 %v156
    %v410 = vunpack.c.l.b16 %v157
    %v411 = vunpack.c.l.b16 %v158
    %v412 = vunpack.c.l.b16 %v159
    %v413 = vunpack.c.l.b16 %v160
    %v414 = vunpack.c.l.b16 %v161
    %v415 = vunpack.c.l.b16 %v162
    %v416 = vunpack.c.l.b16 %v163
    %v417 = vunpack.c.l.b16 %v164
    %v418 = vunpack.c.l.b16 %v165
    %v419 = vunpack.c.l.b16 %v166
    %v420 = vunpack.c.l.b16 %v167
    %v421 = vunpack.c.l.b16 %v168
    %v422 = vunpack.c.l.b16 %v169
    %v423 = vunpack.c.l.b16 %v170
    %v424 = vunpack.c.l.b16 %v171
    %v425 = vunpack.c.l.b16 %v172
    %v426 = vunpack.c.l.b16 %v173
    %v427 = vpack.c.b16 %v332, %v331
    %v428 = vpack.c.b16 %v334, %v333
    %v429 = vpack.c.b16 %v336, %v335
    %v430 = vpack.c.b16 %v338, %v337
    %v431 = vpack.c.b16 %v340, %v339
    %v432 = vpack.c.b16 %v342, %v341
    %v433 = vpack.c.b16 %v344, %v343
    %v434 = vpack.c.b16 %v346, %v345
    %v435 = vpack.c.b16 %v348, %v347
    %v436 = vpack.c.b16 %v350, %v349
    %v437 = vpack.c.b16 %v352, %v351
    %v438 = vpack.c.b16 %v354, %v353
    %v439 = vpack.c.b16 %v356, %v355
    %v440 = vpack.c.b16 %v358, %v357
    %v441 = vpack.c.b16 %v360, %v359
    %v442 = vpack.c.b16 %v362, %v361
    %v443 = vpack.c.b16 %v364, %v363
    %v444 = vpack.c.b16 %v366, %v365
    %v445 = vpack.c.b16 %v368, %v367
    %v446 = vpack.c.b16 %v370, %v369
    %v447 = vpack.c.b16 %v372, %v371
    %v448 = vpack.c.b16 %v374, %v373
    %v449 = vpack.c.b16 %v376, %v375
    %v450 = vpack.c.b16 %v378, %v377
    %v451 = vpack.c.b16 %v380, %v379
    %v452 = vpack.c.b16 %v382, %v381
    %v453 = vpack.c.b16 %v384, %v383
    %v454 = vpack.c.b16 %v386, %v385
    %v455 = vpack.c.b16 %v388, %v387
    %v456 = vpack.c.b16 %v390, %v389
    %v457 = vpack.c.b16 %v392, %v391
    %v458 = vpack.c.b16 %v394, %v393
    %v459 = vpack.c.b16 %v396, %v395
    %v460 = vpack.c.b16 %v398, %v397
    %v461 = vpack.c.b16 %v400, %v399
    %v462 = vpack.c.b16 %v402, %v401
    %v463 = vpack.c.b16 %v404, %v403
    %v464 = vpack.c.b16 %v406, %v405
    %v465 = vpack.c.b16 %v408, %v407
    %v466 = vpack.c.b16 %v410, %v409
    %v467 = vpack.c.b16 %v412, %v411
    %v468 = vpack.c.b16 %v414, %v413
    %v469 = vpack.c.b16 %v416, %v415
    %v470 = vpack.c.b16 %v418, %v417
    %v471 = vpack.c.b16 %v420, %v419
    %v472 = vpack.c.b16 %v422, %v421
    %v473 = vpack.c.b16 %v424, %v423
    %v474 = vpack.c.b16 %v426, %v425
    %523 = vmatprep.subr.bf16.mxu0 0
    %524 = vmatpush1.bf16.msra.mxu0 %v427
    %525 = vmatprep.subr.bf16.mxu0 0
    %526 = vmatpush1.bf16.msra.mxu0 %v428
    %527 = vmatprep.subr.bf16.mxu0 0
    %528 = vmatpush1.bf16.msra.mxu0 %v429
    %529 = vmatprep.subr.bf16.mxu0 0
    %530 = vmatpush1.bf16.msra.mxu0 %v430
    %531 = vmatprep.subr.bf16.mxu0 0
    %532 = vmatpush1.bf16.msra.mxu0 %v431
    %533 = vmatprep.subr.bf16.mxu0 0
    %534 = vmatpush1.bf16.msra.mxu0 %v432
    %535 = vmatprep.subr.bf16.mxu0 0
    %536 = vmatpush1.bf16.msra.mxu0 %v433
    %537 = vmatprep.subr.bf16.mxu0 0
    %538 = vmatpush1.bf16.msra.mxu0 %v434
    %539 = vmatprep.subr.bf16.mxu0 0
    %540 = vmatpush1.bf16.msra.mxu0 %v435
    %541 = vmatprep.subr.bf16.mxu0 0
    %542 = vmatpush1.bf16.msra.mxu0 %v436
    %543 = vmatprep.subr.bf16.mxu0 0
    %544 = vmatpush1.bf16.msra.mxu0 %v437
    %545 = vmatprep.subr.bf16.mxu0 0
    %546 = vmatpush1.bf16.msra.mxu0 %v438
    %547 = vmatprep.subr.bf16.mxu0 0
    %548 = vmatpush1.bf16.msra.mxu0 %v439
    %549 = vmatprep.subr.bf16.mxu0 0
    %550 = vmatpush1.bf16.msra.mxu0 %v440
    %551 = vmatprep.subr.bf16.mxu0 0
    %552 = vmatpush1.bf16.msra.mxu0 %v441
    %553 = vmatprep.subr.bf16.mxu0 0
    %554 = vmatpush1.bf16.msra.mxu0 %v442
    %555 = vmatprep.mubr.bf16.mxu0 %v219
    %556 = vmatmul.mubr.bf16.gmra.mrb[0].mxu0 %v205
    %v557 = vpop.f32.mrb[0].mxu0
    %v558 = vadd.f32 %v179, %v557
    %v559 = vpop.f32.mrb[0].mxu0
    %v560 = vpop.f32.mrb[0].mxu0
    %v561 = vpop.f32.mrb[0].mxu0
    %562 = vdwg.mxu0
    %563 = vmatprep.subr.bf16.mxu0 0
    %564 = vmatpush1.bf16.msra.mxu0 %v443
    %565 = vmatprep.subr.bf16.mxu0 0
    %566 = vmatpush1.bf16.msra.mxu0 %v444
    %567 = vmatprep.subr.bf16.mxu0 0
    %568 = vmatpush1.bf16.msra.mxu0 %v445
    %569 = vmatprep.subr.bf16.mxu0 0
    %570 = vmatpush1.bf16.msra.mxu0 %v446
    %571 = vmatprep.subr.bf16.mxu0 0
    %572 = vmatpush1.bf16.msra.mxu0 %v447
    %573 = vmatprep.subr.bf16.mxu0 0
    %574 = vmatpush1.bf16.msra.mxu0 %v448
    %575 = vmatprep.subr.bf16.mxu0 0
    %576 = vmatpush1.bf16.msra.mxu0 %v449
    %577 = vmatprep.subr.bf16.mxu0 0
    %578 = vmatpush1.bf16.msra.mxu0 %v450
    %579 = vmatprep.subr.bf16.mxu0 0
    %580 = vmatpush1.bf16.msra.mxu0 %v451
    %581 = vmatprep.subr.bf16.mxu0 0
    %582 = vmatpush1.bf16.msra.mxu0 %v452
    %583 = vmatprep.subr.bf16.mxu0 0
    %584 = vmatpush1.bf16.msra.mxu0 %v453
    %585 = vmatprep.subr.bf16.mxu0 0
    %586 = vmatpush1.bf16.msra.mxu0 %v454
    %587 = vmatprep.subr.bf16.mxu0 0
    %588 = vmatpush1.bf16.msra.mxu0 %v455
    %589 = vmatprep.subr.bf16.mxu0 0
    %590 = vmatpush1.bf16.msra.mxu0 %v456
    %591 = vmatprep.subr.bf16.mxu0 0
    %592 = vmatpush1.bf16.msra.mxu0 %v457
    %593 = vmatprep.subr.bf16.mxu0 0
    %594 = vmatpush1.bf16.msra.mxu0 %v458
    %595 = vmatprep.mubr.bf16.mxu0 %v228
    %596 = vmatmul.mubr.bf16.gmra.mrb[0].mxu0 %v227
    %v597 = vpop.f32.mrb[0].mxu0
    %v598 = vadd.f32 %v558, %v597
    %v599 = vpop.f32.mrb[0].mxu0
    %v600 = vpop.f32.mrb[0].mxu0
    %v601 = vpop.f32.mrb[0].mxu0
    %602 = vdwg.mxu0
    %603 = vmatprep.subr.bf16.mxu0 0
    %604 = vmatpush1.bf16.msra.mxu0 %v459
    %605 = vmatprep.subr.bf16.mxu0 0
    %606 = vmatpush1.bf16.msra.mxu0 %v460
    %607 = vmatprep.subr.bf16.mxu0 0
    %608 = vmatpush1.bf16.msra.mxu0 %v461
    %609 = vmatprep.subr.bf16.mxu0 0
    %610 = vmatpush1.bf16.msra.mxu0 %v462
    %611 = vmatprep.subr.bf16.mxu0 0
    %612 = vmatpush1.bf16.msra.mxu0 %v463
    %613 = vmatprep.subr.bf16.mxu0 0
    %614 = vmatpush1.bf16.msra.mxu0 %v464
    %615 = vmatprep.subr.bf16.mxu0 0
    %616 = vmatpush1.bf16.msra.mxu0 %v465
    %617 = vmatprep.subr.bf16.mxu0 0
    %618 = vmatpush1.bf16.msra.mxu0 %v466
    %619 = vmatprep.subr.bf16.mxu0 0
    %620 = vmatpush1.bf16.msra.mxu0 %v467
    %621 = vmatprep.subr.bf16.mxu0 0
    %622 = vmatpush1.bf16.msra.mxu0 %v468
    %623 = vmatprep.subr.bf16.mxu0 0
    %624 = vmatpush1.bf16.msra.mxu0 %v469
    %625 = vmatprep.subr.bf16.mxu0 0
    %626 = vmatpush1.bf16.msra.mxu0 %v470
    %627 = vmatprep.subr.bf16.mxu0 0
    %628 = vmatpush1.bf16.msra.mxu0 %v471
    %629 = vmatprep.subr.bf16.mxu0 0
    %630 = vmatpush1.bf16.msra.mxu0 %v472
    %631 = vmatprep.subr.bf16.mxu0 0
    %632 = vmatpush1.bf16.msra.mxu0 %v473
    %633 = vmatprep.subr.bf16.mxu0 0
    %634 = vmatpush1.bf16.msra.mxu0 %v474
    %635 = vmatprep.mubr.bf16.mxu0 %v226
    %636 = vmatmul.mubr.bf16.gmra.mrb[0].mxu0 %v212
    %v637 = vpop.f32.mrb[0].mxu0
    %v638 = vadd.f32 %v598, %v637
    %v639 = vpop.f32.mrb[0].mxu0
    %v640 = vpop.f32.mrb[0].mxu0
    %v641 = vpop.f32.mrb[0].mxu0
    %642 = vdwg.mxu0
    %v643 = vld [vmem:[%s7] sm:$0x1]
    %v644 = vld [vmem:[%s9] sm:$0x3f]
    %v645 = vld [vmem:[%s1] sm:$0x1]
    %v647 = vlaneseq
    %v648 = vshrl.u32 %v647, 7
    %v649 = vsub.s32 0, %v648
    %v650 = vrot.slane %v645, %v649
    %v652 = vld [vmem:[%s2] sm:$0x1]
    %v654 = vlaneseq
    %v655 = vshrl.u32 %v654, 7
    %v656 = vsub.s32 0, %v655
    %v657 = vrot.slane %v652, %v656
    %v659 = vadd.f32 %v638, %v657
    %v660 = vmax.f32 %v659, 0.0
    %v661 = vpack.c.bf16 %v660, %v660
    %v662 = vld [vmem:[%s6] sm:$0xf]
    %v663 = vld [vmem:[%s6 + $0x4] sm:$0xf]
    %v664 = vld [vmem:[%s6 + $0x8] sm:$0xf]
    %v665 = vld [vmem:[%s6 + $0xc] sm:$0xf]
    %v666 = vld [vmem:[%s6 + $0x10] sm:$0xf]
    %v667 = vld [vmem:[%s6 + $0x14] sm:$0xf]
    %v668 = vld [vmem:[%s6 + $0x18] sm:$0xf]
    %v669 = vld [vmem:[%s6 + $0x1c] sm:$0xf]
    %v670 = vld [vmem:[%s6 + $0x20] sm:$0xf]
    %v671 = vld [vmem:[%s6 + $0x24] sm:$0xf]
    %v672 = vld [vmem:[%s6 + $0x28] sm:$0xf]
    %v673 = vld [vmem:[%s6 + $0x2c] sm:$0xf]
    %v674 = vld [vmem:[%s6 + $0x30] sm:$0xf]
    %v675 = vld [vmem:[%s6 + $0x34] sm:$0xf]
    %v676 = vld [vmem:[%s6 + $0x38] sm:$0xf]
    %v677 = vld [vmem:[%s6 + $0x3c] sm:$0xf]
    %v694 = vunpack.c.l.b16 %v662
    %v695 = vunpack.c.l.b16 %v663
    %v696 = vunpack.c.l.b16 %v664
    %v697 = vunpack.c.l.b16 %v665
    %v698 = vunpack.c.l.b16 %v666
    %v699 = vunpack.c.l.b16 %v667
    %v700 = vunpack.c.l.b16 %v668
    %v701 = vunpack.c.l.b16 %v669
    %v702 = vunpack.c.l.b16 %v670
    %v703 = vunpack.c.l.b16 %v671
    %v704 = vunpack.c.l.b16 %v672
    %v705 = vunpack.c.l.b16 %v673
    %v706 = vunpack.c.l.b16 %v674
    %v707 = vunpack.c.l.b16 %v675
    %v708 = vunpack.c.l.b16 %v676
    %v709 = vunpack.c.l.b16 %v677
    %v710 = vpack.c.b16 %v695, %v694
    %v711 = vpack.c.b16 %v697, %v696
    %v712 = vpack.c.b16 %v699, %v698
    %v713 = vpack.c.b16 %v701, %v700
    %v714 = vpack.c.b16 %v703, %v702
    %v715 = vpack.c.b16 %v705, %v704
    %v716 = vpack.c.b16 %v707, %v706
    %v717 = vpack.c.b16 %v709, %v708
    %726 = vmatprep.subr.bf16.mxu0 0
    %727 = vmatpush1.bf16.msra.mxu0 %v710
    %728 = vmatprep.subr.bf16.mxu0 0
    %729 = vmatpush1.bf16.msra.mxu0 %v711
    %730 = vmatprep.subr.bf16.mxu0 0
    %731 = vmatpush1.bf16.msra.mxu0 %v712
    %732 = vmatprep.subr.bf16.mxu0 0
    %733 = vmatpush1.bf16.msra.mxu0 %v713
    %734 = vmatprep.subr.bf16.mxu0 0
    %735 = vmatpush1.bf16.msra.mxu0 %v714
    %736 = vmatprep.subr.bf16.mxu0 0
    %737 = vmatpush1.bf16.msra.mxu0 %v715
    %738 = vmatprep.subr.bf16.mxu0 0
    %739 = vmatpush1.bf16.msra.mxu0 %v716
    %740 = vmatprep.subr.bf16.mxu0 0
    %741 = vmatpush1.bf16.msra.mxu0 %v717
    %742 = vmatprep.subr.bf16.mxu0 0
    %743 = vmatpush1.bf16.msra.mxu0 0
    %744 = vmatprep.subr.bf16.mxu0 0
    %745 = vmatpush1.bf16.msra.mxu0 0
    %746 = vmatprep.subr.bf16.mxu0 0
    %747 = vmatpush1.bf16.msra.mxu0 0
    %748 = vmatprep.subr.bf16.mxu0 0
    %749 = vmatpush1.bf16.msra.mxu0 0
    %750 = vmatprep.subr.bf16.mxu0 0
    %751 = vmatpush1.bf16.msra.mxu0 0
    %752 = vmatprep.subr.bf16.mxu0 0
    %753 = vmatpush1.bf16.msra.mxu0 0
    %754 = vmatprep.subr.bf16.mxu0 0
    %755 = vmatpush1.bf16.msra.mxu0 0
    %756 = vmatprep.subr.bf16.mxu0 0
    %757 = vmatpush1.bf16.msra.mxu0 0
    %758 = vmatprep.mubr.bf16.mxu0 0
    %759 = vmatmul.mubr.bf16.gmra.mrb[0].mxu0 %v661
    %v760 = vpop.f32.mrb[0].mxu0
    %v761 = vadd.f32 0.0, %v760
    %v762 = vpop.f32.mrb[0].mxu0
    %v763 = vpop.f32.mrb[0].mxu0
    %v764 = vpop.f32.mrb[0].mxu0
    %765 = vdwg.mxu0
    %v766 = vadd.f32 %v650, %v761
    %v768 = vlaneseq
    %v769 = vshrl.u32 %v768, 7
    %v770 = vsub.s32 0, %v769
    %v771 = vrot.slane %v643, %v770
    %v773 = vadd.f32 %v766, %v771
    %v774 = vmax.f32 %v773, 0.0
    %v775 = vpack.c.bf16 %v774, %v774
    %v776 = vld [vmem:[#allocation6] sm:$0xff]
    %v777 = vld [vmem:[#allocation6 + $0x8] sm:$0xff]
    %v778 = vld [vmem:[#allocation6 + $0x10] sm:$0xff]
    %v779 = vld [vmem:[#allocation6 + $0x18] sm:$0xff]
    %v780 = vld [vmem:[#allocation6 + $0x20] sm:$0xff]
    %v781 = vld [vmem:[#allocation6 + $0x28] sm:$0xff]
    %v782 = vld [vmem:[#allocation6 + $0x30] sm:$0xff]
    %v783 = vld [vmem:[#allocation6 + $0x38] sm:$0xff]
    %v784 = vld [vmem:[#allocation6 + $0x40] sm:$0xff]
    %v785 = vld [vmem:[#allocation6 + $0x48] sm:$0xff]
    %v786 = vld [vmem:[#allocation6 + $0x50] sm:$0xff]
    %v787 = vld [vmem:[#allocation6 + $0x58] sm:$0xff]
    %v788 = vld [vmem:[#allocation6 + $0x60] sm:$0xff]
    %v789 = vld [vmem:[#allocation6 + $0x68] sm:$0xff]
    %v790 = vld [vmem:[#allocation6 + $0x70] sm:$0xff]
    %v791 = vld [vmem:[#allocation6 + $0x78] sm:$0xff]
    %v792 = vld [vmem:[#allocation6 + $0x80] sm:$0xff]
    %v793 = vld [vmem:[#allocation6 + $0x88] sm:$0xff]
    %v794 = vld [vmem:[#allocation6 + $0x90] sm:$0xff]
    %v795 = vld [vmem:[#allocation6 + $0x98] sm:$0xff]
    %v796 = vld [vmem:[#allocation6 + $0xa0] sm:$0xff]
    %v797 = vld [vmem:[#allocation6 + $0xa8] sm:$0xff]
    %v798 = vld [vmem:[#allocation6 + $0xb0] sm:$0xff]
    %v799 = vld [vmem:[#allocation6 + $0xb8] sm:$0xff]
    %v800 = vld [vmem:[#allocation6 + $0xc0] sm:$0xff]
    %v801 = vld [vmem:[#allocation6 + $0xc8] sm:$0xff]
    %v802 = vld [vmem:[#allocation6 + $0xd0] sm:$0xff]
    %v803 = vld [vmem:[#allocation6 + $0xd8] sm:$0xff]
    %v804 = vld [vmem:[#allocation6 + $0xe0] sm:$0xff]
    %v805 = vld [vmem:[#allocation6 + $0xe8] sm:$0xff]
    %v806 = vld [vmem:[#allocation6 + $0xf0] sm:$0xff]
    %v807 = vld [vmem:[#allocation6 + $0xf8] sm:$0xff]
    %v808 = vld [vmem:[#allocation6 + $0x100] sm:$0xff]
    %v809 = vld [vmem:[#allocation6 + $0x108] sm:$0xff]
    %v810 = vld [vmem:[#allocation6 + $0x110] sm:$0xff]
    %v811 = vld [vmem:[#allocation6 + $0x118] sm:$0xff]
    %v812 = vld [vmem:[#allocation6 + $0x120] sm:$0xff]
    %v813 = vld [vmem:[#allocation6 + $0x128] sm:$0xff]
    %v814 = vld [vmem:[#allocation6 + $0x130] sm:$0xff]
    %v815 = vld [vmem:[#allocation6 + $0x138] sm:$0xff]
    %v816 = vld [vmem:[#allocation6 + $0x140] sm:$0xff]
    %v817 = vld [vmem:[#allocation6 + $0x148] sm:$0xff]
    %v818 = vld [vmem:[#allocation6 + $0x150] sm:$0xff]
    %v819 = vld [vmem:[#allocation6 + $0x158] sm:$0xff]
    %v820 = vld [vmem:[#allocation6 + $0x160] sm:$0xff]
    %v821 = vld [vmem:[#allocation6 + $0x168] sm:$0xff]
    %v822 = vld [vmem:[#allocation6 + $0x170] sm:$0xff]
    %v823 = vld [vmem:[#allocation6 + $0x178] sm:$0xff]
    %v825 = vlaneseq
    %v826 = vshrl.u32 %v825, 7
    %v827 = vsub.s32 0, %v826
    %v828 = vrot.slane %v644, %v827
    %v829 = vlaneseq
    %v830 = vshrl.u32 %v829, 7
    %v831 = vsub.s32 1, %v830
    %v832 = vrot.slane %v644, %v831
    %v833 = vlaneseq
    %v834 = vshrl.u32 %v833, 7
    %v835 = vsub.s32 2, %v834
    %v836 = vrot.slane %v644, %v835
    %v837 = vlaneseq
    %v838 = vshrl.u32 %v837, 7
    %v839 = vsub.s32 3, %v838
    %v840 = vrot.slane %v644, %v839
    %v841 = vlaneseq
    %v842 = vshrl.u32 %v841, 7
    %v843 = vsub.s32 4, %v842
    %v844 = vrot.slane %v644, %v843
    %v845 = vlaneseq
    %v846 = vshrl.u32 %v845, 7
    %v847 = vsub.s32 5, %v846
    %v848 = vrot.slane %v644, %v847
    %v903 = vunpack.c.l.b16 %v776
    %v904 = vunpack.c.h.b16 %v776
    %v905 = vunpack.c.l.b16 %v777
    %v906 = vunpack.c.h.b16 %v777
    %v907 = vunpack.c.l.b16 %v778
    %v908 = vunpack.c.h.b16 %v778
    %v909 = vunpack.c.l.b16 %v779
    %v910 = vunpack.c.h.b16 %v779
    %v911 = vunpack.c.l.b16 %v780
    %v912 = vunpack.c.h.b16 %v780
    %v913 = vunpack.c.l.b16 %v781
    %v914 = vunpack.c.h.b16 %v781
    %v915 = vunpack.c.l.b16 %v782
    %v916 = vunpack.c.h.b16 %v782
    %v917 = vunpack.c.l.b16 %v783
    %v918 = vunpack.c.h.b16 %v783
    %v919 = vunpack.c.l.b16 %v784
    %v920 = vunpack.c.h.b16 %v784
    %v921 = vunpack.c.l.b16 %v785
    %v922 = vunpack.c.h.b16 %v785
    %v923 = vunpack.c.l.b16 %v786
    %v924 = vunpack.c.h.b16 %v786
    %v925 = vunpack.c.l.b16 %v787
    %v926 = vunpack.c.h.b16 %v787
    %v927 = vunpack.c.l.b16 %v788
    %v928 = vunpack.c.h.b16 %v788
    %v929 = vunpack.c.l.b16 %v789
    %v930 = vunpack.c.h.b16 %v789
    %v931 = vunpack.c.l.b16 %v790
    %v932 = vunpack.c.h.b16 %v790
    %v933 = vunpack.c.l.b16 %v791
    %v934 = vunpack.c.h.b16 %v791
    %v935 = vunpack.c.l.b16 %v792
    %v936 = vunpack.c.h.b16 %v792
    %v937 = vunpack.c.l.b16 %v793
    %v938 = vunpack.c.h.b16 %v793
    %v939 = vunpack.c.l.b16 %v794
    %v940 = vunpack.c.h.b16 %v794
    %v941 = vunpack.c.l.b16 %v795
    %v942 = vunpack.c.h.b16 %v795
    %v943 = vunpack.c.l.b16 %v796
    %v944 = vunpack.c.h.b16 %v796
    %v945 = vunpack.c.l.b16 %v797
    %v946 = vunpack.c.h.b16 %v797
    %v947 = vunpack.c.l.b16 %v798
    %v948 = vunpack.c.h.b16 %v798
    %v949 = vunpack.c.l.b16 %v799
    %v950 = vunpack.c.h.b16 %v799
    %v951 = vunpack.c.l.b16 %v800
    %v952 = vunpack.c.h.b16 %v800
    %v953 = vunpack.c.l.b16 %v801
    %v954 = vunpack.c.h.b16 %v801
    %v955 = vunpack.c.l.b16 %v802
    %v956 = vunpack.c.h.b16 %v802
    %v957 = vunpack.c.l.b16 %v803
    %v958 = vunpack.c.h.b16 %v803
    %v959 = vunpack.c.l.b16 %v804
    %v960 = vunpack.c.h.b16 %v804
    %v961 = vunpack.c.l.b16 %v805
    %v962 = vunpack.c.h.b16 %v805
    %v963 = vunpack.c.l.b16 %v806
    %v964 = vunpack.c.h.b16 %v806
    %v965 = vunpack.c.l.b16 %v807
    %v966 = vunpack.c.h.b16 %v807
    %v967 = vunpack.c.l.b16 %v808
    %v968 = vunpack.c.h.b16 %v808
    %v969 = vunpack.c.l.b16 %v809
    %v970 = vunpack.c.h.b16 %v809
    %v971 = vunpack.c.l.b16 %v810
    %v972 = vunpack.c.h.b16 %v810
    %v973 = vunpack.c.l.b16 %v811
    %v974 = vunpack.c.h.b16 %v811
    %v975 = vunpack.c.l.b16 %v812
    %v976 = vunpack.c.h.b16 %v812
    %v977 = vunpack.c.l.b16 %v813
    %v978 = vunpack.c.h.b16 %v813
    %v979 = vunpack.c.l.b16 %v814
    %v980 = vunpack.c.h.b16 %v814
    %v981 = vunpack.c.l.b16 %v815
    %v982 = vunpack.c.h.b16 %v815
    %v983 = vunpack.c.l.b16 %v816
    %v984 = vunpack.c.h.b16 %v816
    %v985 = vunpack.c.l.b16 %v817
    %v986 = vunpack.c.h.b16 %v817
    %v987 = vunpack.c.l.b16 %v818
    %v988 = vunpack.c.h.b16 %v818
    %v989 = vunpack.c.l.b16 %v819
    %v990 = vunpack.c.h.b16 %v819
    %v991 = vunpack.c.l.b16 %v820
    %v992 = vunpack.c.h.b16 %v820
    %v993 = vunpack.c.l.b16 %v821
    %v994 = vunpack.c.h.b16 %v821
    %v995 = vunpack.c.l.b16 %v822
    %v996 = vunpack.c.h.b16 %v822
    %v997 = vunpack.c.l.b16 %v823
    %v998 = vunpack.c.h.b16 %v823
    %v999 = vpack.c.b16 %v909, %v903
    %v1000 = vpack.c.b16 %v910, %v904
    %v1001 = vpack.c.b16 %v911, %v905
    %v1002 = vpack.c.b16 %v912, %v906
    %v1003 = vpack.c.b16 %v913, %v907
    %v1004 = vpack.c.b16 %v914, %v908
    %v1005 = vpack.c.b16 %v921, %v915
    %v1006 = vpack.c.b16 %v922, %v916
    %v1007 = vpack.c.b16 %v923, %v917
    %v1008 = vpack.c.b16 %v924, %v918
    %v1009 = vpack.c.b16 %v925, %v919
    %v1010 = vpack.c.b16 %v926, %v920
    %v1011 = vpack.c.b16 %v933, %v927
    %v1012 = vpack.c.b16 %v934, %v928
    %v1013 = vpack.c.b16 %v935, %v929
    %v1014 = vpack.c.b16 %v936, %v930
    %v1015 = vpack.c.b16 %v937, %v931
    %v1016 = vpack.c.b16 %v938, %v932
    %v1017 = vpack.c.b16 %v945, %v939
    %v1018 = vpack.c.b16 %v946, %v940
    %v1019 = vpack.c.b16 %v947, %v941
    %v1020 = vpack.c.b16 %v948, %v942
    %v1021 = vpack.c.b16 %v949, %v943
    %v1022 = vpack.c.b16 %v950, %v944
    %v1023 = vpack.c.b16 %v957, %v951
    %v1024 = vpack.c.b16 %v958, %v952
    %v1025 = vpack.c.b16 %v959, %v953
    %v1026 = vpack.c.b16 %v960, %v954
    %v1027 = vpack.c.b16 %v961, %v955
    %v1028 = vpack.c.b16 %v962, %v956
    %v1029 = vpack.c.b16 %v969, %v963
    %v1030 = vpack.c.b16 %v970, %v964
    %v1031 = vpack.c.b16 %v971, %v965
    %v1032 = vpack.c.b16 %v972, %v966
    %v1033 = vpack.c.b16 %v973, %v967
    %v1034 = vpack.c.b16 %v974, %v968
    %v1035 = vpack.c.b16 %v981, %v975
    %v1036 = vpack.c.b16 %v982, %v976
    %v1037 = vpack.c.b16 %v983, %v977
    %v1038 = vpack.c.b16 %v984, %v978
    %v1039 = vpack.c.b16 %v985, %v979
    %v1040 = vpack.c.b16 %v986, %v980
    %v1041 = vpack.c.b16 %v993, %v987
    %v1042 = vpack.c.b16 %v994, %v988
    %v1043 = vpack.c.b16 %v995, %v989
    %v1044 = vpack.c.b16 %v996, %v990
    %v1045 = vpack.c.b16 %v997, %v991
    %v1046 = vpack.c.b16 %v998, %v992
    %1095 = vmatprep.subr.bf16.mxu0 %v1000
    %1096 = vmatpush1.bf16.msra.mxu0 %v999
    %1097 = vmatprep.subr.bf16.mxu0 %v1006
    %1098 = vmatpush1.bf16.msra.mxu0 %v1005
    %1099 = vmatprep.subr.bf16.mxu0 %v1012
    %1100 = vmatpush1.bf16.msra.mxu0 %v1011
    %1101 = vmatprep.subr.bf16.mxu0 %v1018
    %1102 = vmatpush1.bf16.msra.mxu0 %v1017
    %1103 = vmatprep.subr.bf16.mxu0 %v1024
    %1104 = vmatpush1.bf16.msra.mxu0 %v1023
    %1105 = vmatprep.subr.bf16.mxu0 %v1030
    %1106 = vmatpush1.bf16.msra.mxu0 %v1029
    %1107 = vmatprep.subr.bf16.mxu0 %v1036
    %1108 = vmatpush1.bf16.msra.mxu0 %v1035
    %1109 = vmatprep.subr.bf16.mxu0 %v1042
    %1110 = vmatpush1.bf16.msra.mxu0 %v1041
    %1111 = vmatprep.subr.bf16.mxu0 0
    %1112 = vmatpush1.bf16.msra.mxu0 0
    %1113 = vmatprep.subr.bf16.mxu0 0
    %1114 = vmatpush1.bf16.msra.mxu0 0
    %1115 = vmatprep.subr.bf16.mxu0 0
    %1116 = vmatpush1.bf16.msra.mxu0 0
    %1117 = vmatprep.subr.bf16.mxu0 0
    %1118 = vmatpush1.bf16.msra.mxu0 0
    %1119 = vmatprep.subr.bf16.mxu0 0
    %1120 = vmatpush1.bf16.msra.mxu0 0
    %1121 = vmatprep.subr.bf16.mxu0 0
    %1122 = vmatpush1.bf16.msra.mxu0 0
    %1123 = vmatprep.subr.bf16.mxu0 0
    %1124 = vmatpush1.bf16.msra.mxu0 0
    %1125 = vmatprep.subr.bf16.mxu0 0
    %1126 = vmatpush1.bf16.msra.mxu0 0
    %1127 = vmatprep.mubr.bf16.mxu0 0
    %1128 = vmatmul.mubr.bf16.gmra.mrb[0].mxu0 %v775
    %v1129 = vpop.f32.mrb[0].mxu0
    %v1130 = vadd.f32 %v828, %v1129
    %v1131 = vpop.f32.mrb[0].mxu0
    %v1132 = vadd.f32 %v832, %v1131
    %v1133 = vpop.f32.mrb[0].mxu0
    %v1134 = vpop.f32.mrb[0].mxu0
    %1135 = vdwg.mxu0
    %1136 = vmatprep.subr.bf16.mxu0 %v1002
    %1137 = vmatpush1.bf16.msra.mxu0 %v1001
    %1138 = vmatprep.subr.bf16.mxu0 %v1008
    %1139 = vmatpush1.bf16.msra.mxu0 %v1007
    %1140 = vmatprep.subr.bf16.mxu0 %v1014
    %1141 = vmatpush1.bf16.msra.mxu0 %v1013
    %1142 = vmatprep.subr.bf16.mxu0 %v1020
    %1143 = vmatpush1.bf16.msra.mxu0 %v1019
    %1144 = vmatprep.subr.bf16.mxu0 %v1026
    %1145 = vmatpush1.bf16.msra.mxu0 %v1025
    %1146 = vmatprep.subr.bf16.mxu0 %v1032
    %1147 = vmatpush1.bf16.msra.mxu0 %v1031
    %1148 = vmatprep.subr.bf16.mxu0 %v1038
    %1149 = vmatpush1.bf16.msra.mxu0 %v1037
    %1150 = vmatprep.subr.bf16.mxu0 %v1044
    %1151 = vmatpush1.bf16.msra.mxu0 %v1043
    %1152 = vmatprep.subr.bf16.mxu0 0
    %1153 = vmatpush1.bf16.msra.mxu0 0
    %1154 = vmatprep.subr.bf16.mxu0 0
    %1155 = vmatpush1.bf16.msra.mxu0 0
    %1156 = vmatprep.subr.bf16.mxu0 0
    %1157 = vmatpush1.bf16.msra.mxu0 0
    %1158 = vmatprep.subr.bf16.mxu0 0
    %1159 = vmatpush1.bf16.msra.mxu0 0
    %1160 = vmatprep.subr.bf16.mxu0 0
    %1161 = vmatpush1.bf16.msra.mxu0 0
    %1162 = vmatprep.subr.bf16.mxu0 0
    %1163 = vmatpush1.bf16.msra.mxu0 0
    %1164 = vmatprep.subr.bf16.mxu0 0
    %1165 = vmatpush1.bf16.msra.mxu0 0
    %1166 = vmatprep.subr.bf16.mxu0 0
    %1167 = vmatpush1.bf16.msra.mxu0 0
    %1168 = vmatprep.mubr.bf16.mxu0 0
    %1169 = vmatmul.mubr.bf16.gmra.mrb[0].mxu0 %v775
    %v1170 = vpop.f32.mrb[0].mxu0
    %v1171 = vadd.f32 %v836, %v1170
    %v1172 = vpop.f32.mrb[0].mxu0
    %v1173 = vadd.f32 %v840, %v1172
    %v1174 = vpop.f32.mrb[0].mxu0
    %v1175 = vpop.f32.mrb[0].mxu0
    %1176 = vdwg.mxu0
    %1177 = vmatprep.subr.bf16.mxu0 %v1004
    %1178 = vmatpush1.bf16.msra.mxu0 %v1003
    %1179 = vmatprep.subr.bf16.mxu0 %v1010
    %1180 = vmatpush1.bf16.msra.mxu0 %v1009
    %1181 = vmatprep.subr.bf16.mxu0 %v1016
    %1182 = vmatpush1.bf16.msra.mxu0 %v1015
    %1183 = vmatprep.subr.bf16.mxu0 %v1022
    %1184 = vmatpush1.bf16.msra.mxu0 %v1021
    %1185 = vmatprep.subr.bf16.mxu0 %v1028
    %1186 = vmatpush1.bf16.msra.mxu0 %v1027
    %1187 = vmatprep.subr.bf16.mxu0 %v1034
    %1188 = vmatpush1.bf16.msra.mxu0 %v1033
    %1189 = vmatprep.subr.bf16.mxu0 %v1040
    %1190 = vmatpush1.bf16.msra.mxu0 %v1039
    %1191 = vmatprep.subr.bf16.mxu0 %v1046
    %1192 = vmatpush1.bf16.msra.mxu0 %v1045
    %1193 = vmatprep.subr.bf16.mxu0 0
    %1194 = vmatpush1.bf16.msra.mxu0 0
    %1195 = vmatprep.subr.bf16.mxu0 0
    %1196 = vmatpush1.bf16.msra.mxu0 0
    %1197 = vmatprep.subr.bf16.mxu0 0
    %1198 = vmatpush1.bf16.msra.mxu0 0
    %1199 = vmatprep.subr.bf16.mxu0 0
    %1200 = vmatpush1.bf16.msra.mxu0 0
    %1201 = vmatprep.subr.bf16.mxu0 0
    %1202 = vmatpush1.bf16.msra.mxu0 0
    %1203 = vmatprep.subr.bf16.mxu0 0
    %1204 = vmatpush1.bf16.msra.mxu0 0
    %1205 = vmatprep.subr.bf16.mxu0 0
    %1206 = vmatpush1.bf16.msra.mxu0 0
    %1207 = vmatprep.subr.bf16.mxu0 0
    %1208 = vmatpush1.bf16.msra.mxu0 0
    %1209 = vmatprep.mubr.bf16.mxu0 0
    %1210 = vmatmul.mubr.bf16.gmra.mrb[0].mxu0 %v775
    %v1211 = vpop.f32.mrb[0].mxu0
    %v1212 = vadd.f32 %v844, %v1211
    %v1213 = vpop.f32.mrb[0].mxu0
    %v1214 = vadd.f32 %v848, %v1213
    %v1215 = vpop.f32.mrb[0].mxu0
    %v1216 = vpop.f32.mrb[0].mxu0
    %1217 = vdwg.mxu0
    %v1218 = vtanh.pop %v1130
    %v1219 = vtanh.pop %v1132
    %v1220 = vtanh.pop %v1171
    %v1221 = vtanh.pop %v1173
    %v1222 = vtanh.pop %v1212
    %v1223 = vtanh.pop %v1214
    %v1224 = vpack.c.bf16 %v1218, %v1218
    %v1225 = vpack.c.bf16 %v1219, %v1219
    %v1226 = vpack.c.bf16 %v1220, %v1220
    %v1227 = vpack.c.bf16 %v1221, %v1221
    %v1228 = vpack.c.bf16 %v1222, %v1222
    %v1229 = vpack.c.bf16 %v1223, %v1223
    %v1230 = vld [vmem:[#allocation4] sm:$0xf]
    %v1231 = vld [vmem:[#allocation4 + $0x4] sm:$0xf]
    %v1232 = vld [vmem:[#allocation4 + $0x8] sm:$0xf]
    %v1233 = vld [vmem:[#allocation4 + $0xc] sm:$0xf]
    %v1234 = vld [vmem:[#allocation4 + $0x10] sm:$0xf]
    %v1235 = vld [vmem:[#allocation4 + $0x14] sm:$0xf]
    %v1236 = vld [vmem:[#allocation4 + $0x18] sm:$0xf]
    %v1237 = vld [vmem:[#allocation4 + $0x1c] sm:$0xf]
    %v1238 = vld [vmem:[#allocation4 + $0x20] sm:$0xf]
    %v1239 = vld [vmem:[#allocation4 + $0x24] sm:$0xf]
    %v1240 = vld [vmem:[#allocation4 + $0x28] sm:$0xf]
    %v1241 = vld [vmem:[#allocation4 + $0x2c] sm:$0xf]
    %v1242 = vld [vmem:[#allocation4 + $0x30] sm:$0xf]
    %v1243 = vld [vmem:[#allocation4 + $0x34] sm:$0xf]
    %v1244 = vld [vmem:[#allocation4 + $0x38] sm:$0xf]
    %v1245 = vld [vmem:[#allocation4 + $0x3c] sm:$0xf]
    %v1246 = vld [vmem:[#allocation4 + $0x40] sm:$0xf]
    %v1247 = vld [vmem:[#allocation4 + $0x44] sm:$0xf]
    %v1248 = vld [vmem:[#allocation4 + $0x48] sm:$0xf]
    %v1249 = vld [vmem:[#allocation4 + $0x4c] sm:$0xf]
    %v1250 = vld [vmem:[#allocation4 + $0x50] sm:$0xf]
    %v1251 = vld [vmem:[#allocation4 + $0x54] sm:$0xf]
    %v1252 = vld [vmem:[#allocation4 + $0x58] sm:$0xf]
    %v1253 = vld [vmem:[#allocation4 + $0x5c] sm:$0xf]
    %v1254 = vld [vmem:[#allocation4 + $0x60] sm:$0xf]
    %v1255 = vld [vmem:[#allocation4 + $0x64] sm:$0xf]
    %v1256 = vld [vmem:[#allocation4 + $0x68] sm:$0xf]
    %v1257 = vld [vmem:[#allocation4 + $0x6c] sm:$0xf]
    %v1258 = vld [vmem:[#allocation4 + $0x70] sm:$0xf]
    %v1259 = vld [vmem:[#allocation4 + $0x74] sm:$0xf]
    %v1260 = vld [vmem:[#allocation4 + $0x78] sm:$0xf]
    %v1261 = vld [vmem:[#allocation4 + $0x7c] sm:$0xf]
    %v1262 = vld [vmem:[#allocation4 + $0x80] sm:$0xf]
    %v1263 = vld [vmem:[#allocation4 + $0x84] sm:$0xf]
    %v1264 = vld [vmem:[#allocation4 + $0x88] sm:$0xf]
    %v1265 = vld [vmem:[#allocation4 + $0x8c] sm:$0xf]
    %v1266 = vld [vmem:[#allocation4 + $0x90] sm:$0xf]
    %v1267 = vld [vmem:[#allocation4 + $0x94] sm:$0xf]
    %v1268 = vld [vmem:[#allocation4 + $0x98] sm:$0xf]
    %v1269 = vld [vmem:[#allocation4 + $0x9c] sm:$0xf]
    %v1270 = vld [vmem:[#allocation4 + $0xa0] sm:$0xf]
    %v1271 = vld [vmem:[#allocation4 + $0xa4] sm:$0xf]
    %v1272 = vld [vmem:[#allocation4 + $0xa8] sm:$0xf]
    %v1273 = vld [vmem:[#allocation4 + $0xac] sm:$0xf]
    %v1274 = vld [vmem:[#allocation4 + $0xb0] sm:$0xf]
    %v1275 = vld [vmem:[#allocation4 + $0xb4] sm:$0xf]
    %v1276 = vld [vmem:[#allocation4 + $0xb8] sm:$0xf]
    %v1277 = vld [vmem:[#allocation4 + $0xbc] sm:$0xf]
    %v1278 = vld [vmem:[#allocation4 + $0xc0] sm:$0xf]
    %v1279 = vld [vmem:[#allocation4 + $0xc4] sm:$0xf]
    %v1280 = vld [vmem:[#allocation4 + $0xc8] sm:$0xf]
    %v1281 = vld [vmem:[#allocation4 + $0xcc] sm:$0xf]
    %v1282 = vld [vmem:[#allocation4 + $0xd0] sm:$0xf]
    %v1283 = vld [vmem:[#allocation4 + $0xd4] sm:$0xf]
    %v1284 = vld [vmem:[#allocation4 + $0xd8] sm:$0xf]
    %v1285 = vld [vmem:[#allocation4 + $0xdc] sm:$0xf]
    %v1286 = vld [vmem:[#allocation4 + $0xe0] sm:$0xf]
    %v1287 = vld [vmem:[#allocation4 + $0xe4] sm:$0xf]
    %v1288 = vld [vmem:[#allocation4 + $0xe8] sm:$0xf]
    %v1289 = vld [vmem:[#allocation4 + $0xec] sm:$0xf]
    %v1290 = vld [vmem:[#allocation4 + $0xf0] sm:$0xf]
    %v1291 = vld [vmem:[#allocation4 + $0xf4] sm:$0xf]
    %v1292 = vld [vmem:[#allocation4 + $0xf8] sm:$0xf]
    %v1293 = vld [vmem:[#allocation4 + $0xfc] sm:$0xf]
    %v1294 = vld [vmem:[#allocation4 + $0x100] sm:$0xf]
    %v1295 = vld [vmem:[#allocation4 + $0x104] sm:$0xf]
    %v1296 = vld [vmem:[#allocation4 + $0x108] sm:$0xf]
    %v1297 = vld [vmem:[#allocation4 + $0x10c] sm:$0xf]
    %v1298 = vld [vmem:[#allocation4 + $0x110] sm:$0xf]
    %v1299 = vld [vmem:[#allocation4 + $0x114] sm:$0xf]
    %v1300 = vld [vmem:[#allocation4 + $0x118] sm:$0xf]
    %v1301 = vld [vmem:[#allocation4 + $0x11c] sm:$0xf]
    %v1302 = vld [vmem:[#allocation4 + $0x120] sm:$0xf]
    %v1303 = vld [vmem:[#allocation4 + $0x124] sm:$0xf]
    %v1304 = vld [vmem:[#allocation4 + $0x128] sm:$0xf]
    %v1305 = vld [vmem:[#allocation4 + $0x12c] sm:$0xf]
    %v1306 = vld [vmem:[#allocation4 + $0x130] sm:$0xf]
    %v1307 = vld [vmem:[#allocation4 + $0x134] sm:$0xf]
    %v1308 = vld [vmem:[#allocation4 + $0x138] sm:$0xf]
    %v1309 = vld [vmem:[#allocation4 + $0x13c] sm:$0xf]
    %v1310 = vld [vmem:[#allocation4 + $0x140] sm:$0xf]
    %v1311 = vld [vmem:[#allocation4 + $0x144] sm:$0xf]
    %v1312 = vld [vmem:[#allocation4 + $0x148] sm:$0xf]
    %v1313 = vld [vmem:[#allocation4 + $0x14c] sm:$0xf]
    %v1314 = vld [vmem:[#allocation4 + $0x150] sm:$0xf]
    %v1315 = vld [vmem:[#allocation4 + $0x154] sm:$0xf]
    %v1316 = vld [vmem:[#allocation4 + $0x158] sm:$0xf]
    %v1317 = vld [vmem:[#allocation4 + $0x15c] sm:$0xf]
    %v1318 = vld [vmem:[#allocation4 + $0x160] sm:$0xf]
    %v1319 = vld [vmem:[#allocation4 + $0x164] sm:$0xf]
    %v1320 = vld [vmem:[#allocation4 + $0x168] sm:$0xf]
    %v1321 = vld [vmem:[#allocation4 + $0x16c] sm:$0xf]
    %v1322 = vld [vmem:[#allocation4 + $0x170] sm:$0xf]
    %v1323 = vld [vmem:[#allocation4 + $0x174] sm:$0xf]
    %v1324 = vld [vmem:[#allocation4 + $0x178] sm:$0xf]
    %v1325 = vld [vmem:[#allocation4 + $0x17c] sm:$0xf]
    %v1422 = vunpack.c.l.b16 %v1230
    %v1423 = vunpack.c.l.b16 %v1231
    %v1424 = vunpack.c.l.b16 %v1232
    %v1425 = vunpack.c.l.b16 %v1233
    %v1426 = vunpack.c.l.b16 %v1234
    %v1427 = vunpack.c.l.b16 %v1235
    %v1428 = vunpack.c.l.b16 %v1236
    %v1429 = vunpack.c.l.b16 %v1237
    %v1430 = vunpack.c.l.b16 %v1238
    %v1431 = vunpack.c.l.b16 %v1239
    %v1432 = vunpack.c.l.b16 %v1240
    %v1433 = vunpack.c.l.b16 %v1241
    %v1434 = vunpack.c.l.b16 %v1242
    %v1435 = vunpack.c.l.b16 %v1243
    %v1436 = vunpack.c.l.b16 %v1244
    %v1437 = vunpack.c.l.b16 %v1245
    %v1438 = vunpack.c.l.b16 %v1246
    %v1439 = vunpack.c.l.b16 %v1247
    %v1440 = vunpack.c.l.b16 %v1248
    %v1441 = vunpack.c.l.b16 %v1249
    %v1442 = vunpack.c.l.b16 %v1250
    %v1443 = vunpack.c.l.b16 %v1251
    %v1444 = vunpack.c.l.b16 %v1252
    %v1445 = vunpack.c.l.b16 %v1253
    %v1446 = vunpack.c.l.b16 %v1254
    %v1447 = vunpack.c.l.b16 %v1255
    %v1448 = vunpack.c.l.b16 %v1256
    %v1449 = vunpack.c.l.b16 %v1257
    %v1450 = vunpack.c.l.b16 %v1258
    %v1451 = vunpack.c.l.b16 %v1259
    %v1452 = vunpack.c.l.b16 %v1260
    %v1453 = vunpack.c.l.b16 %v1261
    %v1454 = vunpack.c.l.b16 %v1262
    %v1455 = vunpack.c.l.b16 %v1263
    %v1456 = vunpack.c.l.b16 %v1264
    %v1457 = vunpack.c.l.b16 %v1265
    %v1458 = vunpack.c.l.b16 %v1266
    %v1459 = vunpack.c.l.b16 %v1267
    %v1460 = vunpack.c.l.b16 %v1268
    %v1461 = vunpack.c.l.b16 %v1269
    %v1462 = vunpack.c.l.b16 %v1270
    %v1463 = vunpack.c.l.b16 %v1271
    %v1464 = vunpack.c.l.b16 %v1272
    %v1465 = vunpack.c.l.b16 %v1273
    %v1466 = vunpack.c.l.b16 %v1274
    %v1467 = vunpack.c.l.b16 %v1275
    %v1468 = vunpack.c.l.b16 %v1276
    %v1469 = vunpack.c.l.b16 %v1277
    %v1470 = vunpack.c.l.b16 %v1278
    %v1471 = vunpack.c.l.b16 %v1279
    %v1472 = vunpack.c.l.b16 %v1280
    %v1473 = vunpack.c.l.b16 %v1281
    %v1474 = vunpack.c.l.b16 %v1282
    %v1475 = vunpack.c.l.b16 %v1283
    %v1476 = vunpack.c.l.b16 %v1284
    %v1477 = vunpack.c.l.b16 %v1285
    %v1478 = vunpack.c.l.b16 %v1286
    %v1479 = vunpack.c.l.b16 %v1287
    %v1480 = vunpack.c.l.b16 %v1288
    %v1481 = vunpack.c.l.b16 %v1289
    %v1482 = vunpack.c.l.b16 %v1290
    %v1483 = vunpack.c.l.b16 %v1291
    %v1484 = vunpack.c.l.b16 %v1292
    %v1485 = vunpack.c.l.b16 %v1293
    %v1486 = vunpack.c.l.b16 %v1294
    %v1487 = vunpack.c.l.b16 %v1295
    %v1488 = vunpack.c.l.b16 %v1296
    %v1489 = vunpack.c.l.b16 %v1297
    %v1490 = vunpack.c.l.b16 %v1298
    %v1491 = vunpack.c.l.b16 %v1299
    %v1492 = vunpack.c.l.b16 %v1300
    %v1493 = vunpack.c.l.b16 %v1301
    %v1494 = vunpack.c.l.b16 %v1302
    %v1495 = vunpack.c.l.b16 %v1303
    %v1496 = vunpack.c.l.b16 %v1304
    %v1497 = vunpack.c.l.b16 %v1305
    %v1498 = vunpack.c.l.b16 %v1306
    %v1499 = vunpack.c.l.b16 %v1307
    %v1500 = vunpack.c.l.b16 %v1308
    %v1501 = vunpack.c.l.b16 %v1309
    %v1502 = vunpack.c.l.b16 %v1310
    %v1503 = vunpack.c.l.b16 %v1311
    %v1504 = vunpack.c.l.b16 %v1312
    %v1505 = vunpack.c.l.b16 %v1313
    %v1506 = vunpack.c.l.b16 %v1314
    %v1507 = vunpack.c.l.b16 %v1315
    %v1508 = vunpack.c.l.b16 %v1316
    %v1509 = vunpack.c.l.b16 %v1317
    %v1510 = vunpack.c.l.b16 %v1318
    %v1511 = vunpack.c.l.b16 %v1319
    %v1512 = vunpack.c.l.b16 %v1320
    %v1513 = vunpack.c.l.b16 %v1321
    %v1514 = vunpack.c.l.b16 %v1322
    %v1515 = vunpack.c.l.b16 %v1323
    %v1516 = vunpack.c.l.b16 %v1324
    %v1517 = vunpack.c.l.b16 %v1325
    %v1518 = vpack.c.b16 %v1423, %v1422
    %v1519 = vpack.c.b16 %v1425, %v1424
    %v1520 = vpack.c.b16 %v1427, %v1426
    %v1521 = vpack.c.b16 %v1429, %v1428
    %v1522 = vpack.c.b16 %v1431, %v1430
    %v1523 = vpack.c.b16 %v1433, %v1432
    %v1524 = vpack.c.b16 %v1435, %v1434
    %v1525 = vpack.c.b16 %v1437, %v1436
    %v1526 = vpack.c.b16 %v1439, %v1438
    %v1527 = vpack.c.b16 %v1441, %v1440
    %v1528 = vpack.c.b16 %v1443, %v1442
    %v1529 = vpack.c.b16 %v1445, %v1444
    %v1530 = vpack.c.b16 %v1447, %v1446
    %v1531 = vpack.c.b16 %v1449, %v1448
    %v1532 = vpack.c.b16 %v1451, %v1450
    %v1533 = vpack.c.b16 %v1453, %v1452
    %v1534 = vpack.c.b16 %v1455, %v1454
    %v1535 = vpack.c.b16 %v1457, %v1456
    %v1536 = vpack.c.b16 %v1459, %v1458
    %v1537 = vpack.c.b16 %v1461, %v1460
    %v1538 = vpack.c.b16 %v1463, %v1462
    %v1539 = vpack.c.b16 %v1465, %v1464
    %v1540 = vpack.c.b16 %v1467, %v1466
    %v1541 = vpack.c.b16 %v1469, %v1468
    %v1542 = vpack.c.b16 %v1471, %v1470
    %v1543 = vpack.c.b16 %v1473, %v1472
    %v1544 = vpack.c.b16 %v1475, %v1474
    %v1545 = vpack.c.b16 %v1477, %v1476
    %v1546 = vpack.c.b16 %v1479, %v1478
    %v1547 = vpack.c.b16 %v1481, %v1480
    %v1548 = vpack.c.b16 %v1483, %v1482
    %v1549 = vpack.c.b16 %v1485, %v1484
    %v1550 = vpack.c.b16 %v1487, %v1486
    %v1551 = vpack.c.b16 %v1489, %v1488
    %v1552 = vpack.c.b16 %v1491, %v1490
    %v1553 = vpack.c.b16 %v1493, %v1492
    %v1554 = vpack.c.b16 %v1495, %v1494
    %v1555 = vpack.c.b16 %v1497, %v1496
    %v1556 = vpack.c.b16 %v1499, %v1498
    %v1557 = vpack.c.b16 %v1501, %v1500
    %v1558 = vpack.c.b16 %v1503, %v1502
    %v1559 = vpack.c.b16 %v1505, %v1504
    %v1560 = vpack.c.b16 %v1507, %v1506
    %v1561 = vpack.c.b16 %v1509, %v1508
    %v1562 = vpack.c.b16 %v1511, %v1510
    %v1563 = vpack.c.b16 %v1513, %v1512
    %v1564 = vpack.c.b16 %v1515, %v1514
    %v1565 = vpack.c.b16 %v1517, %v1516
    %1614 = vmatprep.subr.bf16.mxu0 0
    %1615 = vmatpush1.bf16.msra.mxu0 %v1518
    %1616 = vmatprep.subr.bf16.mxu0 0
    %1617 = vmatpush1.bf16.msra.mxu0 %v1519
    %1618 = vmatprep.subr.bf16.mxu0 0
    %1619 = vmatpush1.bf16.msra.mxu0 %v1520
    %1620 = vmatprep.subr.bf16.mxu0 0
    %1621 = vmatpush1.bf16.msra.mxu0 %v1521
    %1622 = vmatprep.subr.bf16.mxu0 0
    %1623 = vmatpush1.bf16.msra.mxu0 %v1522
    %1624 = vmatprep.subr.bf16.mxu0 0
    %1625 = vmatpush1.bf16.msra.mxu0 %v1523
    %1626 = vmatprep.subr.bf16.mxu0 0
    %1627 = vmatpush1.bf16.msra.mxu0 %v1524
    %1628 = vmatprep.subr.bf16.mxu0 0
    %1629 = vmatpush1.bf16.msra.mxu0 %v1525
    %1630 = vmatprep.subr.bf16.mxu0 0
    %1631 = vmatpush1.bf16.msra.mxu0 %v1526
    %1632 = vmatprep.subr.bf16.mxu0 0
    %1633 = vmatpush1.bf16.msra.mxu0 %v1527
    %1634 = vmatprep.subr.bf16.mxu0 0
    %1635 = vmatpush1.bf16.msra.mxu0 %v1528
    %1636 = vmatprep.subr.bf16.mxu0 0
    %1637 = vmatpush1.bf16.msra.mxu0 %v1529
    %1638 = vmatprep.subr.bf16.mxu0 0
    %1639 = vmatpush1.bf16.msra.mxu0 %v1530
    %1640 = vmatprep.subr.bf16.mxu0 0
    %1641 = vmatpush1.bf16.msra.mxu0 %v1531
    %1642 = vmatprep.subr.bf16.mxu0 0
    %1643 = vmatpush1.bf16.msra.mxu0 %v1532
    %1644 = vmatprep.subr.bf16.mxu0 0
    %1645 = vmatpush1.bf16.msra.mxu0 %v1533
    %1646 = vmatprep.mubr.bf16.mxu0 %v1225
    %1647 = vmatmul.mubr.bf16.gmra.mrb[0].mxu0 %v1224
    %v1648 = vpop.f32.mrb[0].mxu0
    %v1649 = vadd.f32 0.0, %v1648
    %v1650 = vpop.f32.mrb[0].mxu0
    %v1651 = vpop.f32.mrb[0].mxu0
    %v1652 = vpop.f32.mrb[0].mxu0
    %1653 = vdwg.mxu0
    %1654 = vmatprep.subr.bf16.mxu0 0
    %1655 = vmatpush1.bf16.msra.mxu0 %v1534
    %1656 = vmatprep.subr.bf16.mxu0 0
    %1657 = vmatpush1.bf16.msra.mxu0 %v1535
    %1658 = vmatprep.subr.bf16.mxu0 0
    %1659 = vmatpush1.bf16.msra.mxu0 %v1536
    %1660 = vmatprep.subr.bf16.mxu0 0
    %1661 = vmatpush1.bf16.msra.mxu0 %v1537
    %1662 = vmatprep.subr.bf16.mxu0 0
    %1663 = vmatpush1.bf16.msra.mxu0 %v1538
    %1664 = vmatprep.subr.bf16.mxu0 0
    %1665 = vmatpush1.bf16.msra.mxu0 %v1539
    %1666 = vmatprep.subr.bf16.mxu0 0
    %1667 = vmatpush1.bf16.msra.mxu0 %v1540
    %1668 = vmatprep.subr.bf16.mxu0 0
    %1669 = vmatpush1.bf16.msra.mxu0 %v1541
    %1670 = vmatprep.subr.bf16.mxu0 0
    %1671 = vmatpush1.bf16.msra.mxu0 %v1542
    %1672 = vmatprep.subr.bf16.mxu0 0
    %1673 = vmatpush1.bf16.msra.mxu0 %v1543
    %1674 = vmatprep.subr.bf16.mxu0 0
    %1675 = vmatpush1.bf16.msra.mxu0 %v1544
    %1676 = vmatprep.subr.bf16.mxu0 0
    %1677 = vmatpush1.bf16.msra.mxu0 %v1545
    %1678 = vmatprep.subr.bf16.mxu0 0
    %1679 = vmatpush1.bf16.msra.mxu0 %v1546
    %1680 = vmatprep.subr.bf16.mxu0 0
    %1681 = vmatpush1.bf16.msra.mxu0 %v1547
    %1682 = vmatprep.subr.bf16.mxu0 0
    %1683 = vmatpush1.bf16.msra.mxu0 %v1548
    %1684 = vmatprep.subr.bf16.mxu0 0
    %1685 = vmatpush1.bf16.msra.mxu0 %v1549
    %1686 = vmatprep.mubr.bf16.mxu0 %v1227
    %1687 = vmatmul.mubr.bf16.gmra.mrb[0].mxu0 %v1226
    %v1688 = vpop.f32.mrb[0].mxu0
    %v1689 = vadd.f32 %v1649, %v1688
    %v1690 = vpop.f32.mrb[0].mxu0
    %v1691 = vpop.f32.mrb[0].mxu0
    %v1692 = vpop.f32.mrb[0].mxu0
    %1693 = vdwg.mxu0
    %1694 = vmatprep.subr.bf16.mxu0 0
    %1695 = vmatpush1.bf16.msra.mxu0 %v1550
    %1696 = vmatprep.subr.bf16.mxu0 0
    %1697 = vmatpush1.bf16.msra.mxu0 %v1551
    %1698 = vmatprep.subr.bf16.mxu0 0
    %1699 = vmatpush1.bf16.msra.mxu0 %v1552
    %1700 = vmatprep.subr.bf16.mxu0 0
    %1701 = vmatpush1.bf16.msra.mxu0 %v1553
    %1702 = vmatprep.subr.bf16.mxu0 0
    %1703 = vmatpush1.bf16.msra.mxu0 %v1554
    %1704 = vmatprep.subr.bf16.mxu0 0
    %1705 = vmatpush1.bf16.msra.mxu0 %v1555
    %1706 = vmatprep.subr.bf16.mxu0 0
    %1707 = vmatpush1.bf16.msra.mxu0 %v1556
    %1708 = vmatprep.subr.bf16.mxu0 0
    %1709 = vmatpush1.bf16.msra.mxu0 %v1557
    %1710 = vmatprep.subr.bf16.mxu0 0
    %1711 = vmatpush1.bf16.msra.mxu0 %v1558
    %1712 = vmatprep.subr.bf16.mxu0 0
    %1713 = vmatpush1.bf16.msra.mxu0 %v1559
    %1714 = vmatprep.subr.bf16.mxu0 0
    %1715 = vmatpush1.bf16.msra.mxu0 %v1560
    %1716 = vmatprep.subr.bf16.mxu0 0
    %1717 = vmatpush1.bf16.msra.mxu0 %v1561
    %1718 = vmatprep.subr.bf16.mxu0 0
    %1719 = vmatpush1.bf16.msra.mxu0 %v1562
    %1720 = vmatprep.subr.bf16.mxu0 0
    %1721 = vmatpush1.bf16.msra.mxu0 %v1563
    %1722 = vmatprep.subr.bf16.mxu0 0
    %1723 = vmatpush1.bf16.msra.mxu0 %v1564
    %1724 = vmatprep.subr.bf16.mxu0 0
    %1725 = vmatpush1.bf16.msra.mxu0 %v1565
    %1726 = vmatprep.mubr.bf16.mxu0 %v1229
    %1727 = vmatmul.mubr.bf16.gmra.mrb[0].mxu0 %v1228
    %v1728 = vpop.f32.mrb[0].mxu0
    %v1729 = vadd.f32 %v1689, %v1728
    %v1730 = vpop.f32.mrb[0].mxu0
    %v1731 = vpop.f32.mrb[0].mxu0
    %v1732 = vpop.f32.mrb[0].mxu0
    %1733 = vdwg.mxu0
    %v1734 = vadd.f32 %v638, %v1729
    %v1735 = vmax.f32 %v1734, 0.0
    %v1736 = vpack.c.bf16 %v1735, %v1735
    %1737 = vmatprep.subr.bf16.mxu0 0
    %1738 = vmatpush1.bf16.msra.mxu0 %v710
    %1739 = vmatprep.subr.bf16.mxu0 0
    %1740 = vmatpush1.bf16.msra.mxu0 %v711
    %1741 = vmatprep.subr.bf16.mxu0 0
    %1742 = vmatpush1.bf16.msra.mxu0 %v712
    %1743 = vmatprep.subr.bf16.mxu0 0
    %1744 = vmatpush1.bf16.msra.mxu0 %v713
    %1745 = vmatprep.subr.bf16.mxu0 0
    %1746 = vmatpush1.bf16.msra.mxu0 %v714
    %1747 = vmatprep.subr.bf16.mxu0 0
    %1748 = vmatpush1.bf16.msra.mxu0 %v715
    %1749 = vmatprep.subr.bf16.mxu0 0
    %1750 = vmatpush1.bf16.msra.mxu0 %v716
    %1751 = vmatprep.subr.bf16.mxu0 0
    %1752 = vmatpush1.bf16.msra.mxu0 %v717
    %1753 = vmatprep.subr.bf16.mxu0 0
    %1754 = vmatpush1.bf16.msra.mxu0 0
    %1755 = vmatprep.subr.bf16.mxu0 0
    %1756 = vmatpush1.bf16.msra.mxu0 0
    %1757 = vmatprep.subr.bf16.mxu0 0
    %1758 = vmatpush1.bf16.msra.mxu0 0
    %1759 = vmatprep.subr.bf16.mxu0 0
    %1760 = vmatpush1.bf16.msra.mxu0 0
    %1761 = vmatprep.subr.bf16.mxu0 0
    %1762 = vmatpush1.bf16.msra.mxu0 0
    %1763 = vmatprep.subr.bf16.mxu0 0
    %1764 = vmatpush1.bf16.msra.mxu0 0
    %1765 = vmatprep.subr.bf16.mxu0 0
    %1766 = vmatpush1.bf16.msra.mxu0 0
    %1767 = vmatprep.subr.bf16.mxu0 0
    %1768 = vmatpush1.bf16.msra.mxu0 0
    %1769 = vmatprep.mubr.bf16.mxu0 0
    %1770 = vmatmul.mubr.bf16.gmra.mrb[0].mxu0 %v1736
    %v1771 = vpop.f32.mrb[0].mxu0
    %v1772 = vadd.f32 0.0, %v1771
    %v1773 = vpop.f32.mrb[0].mxu0
    %v1774 = vpop.f32.mrb[0].mxu0
    %v1775 = vpop.f32.mrb[0].mxu0
    %1776 = vdwg.mxu0
    %v1777 = vadd.f32 %v773, %v1772
    %v1778 = vadd.f32 %v1777, %v771
    %v1779 = vmax.f32 %v1778, 0.0
    %v1780 = vpack.c.bf16 %v1779, %v1779
    %1781 = vmatprep.subr.bf16.mxu0 %v1000
    %1782 = vmatpush1.bf16.msra.mxu0 %v999
    %1783 = vmatprep.subr.bf16.mxu0 %v1006
    %1784 = vmatpush1.bf16.msra.mxu0 %v1005
    %1785 = vmatprep.subr.bf16.mxu0 %v1012
    %1786 = vmatpush1.bf16.msra.mxu0 %v1011
    %1787 = vmatprep.subr.bf16.mxu0 %v1018
    %1788 = vmatpush1.bf16.msra.mxu0 %v1017
    %1789 = vmatprep.subr.bf16.mxu0 %v1024
    %1790 = vmatpush1.bf16.msra.mxu0 %v1023
    %1791 = vmatprep.subr.bf16.mxu0 %v1030
    %1792 = vmatpush1.bf16.msra.mxu0 %v1029
    %1793 = vmatprep.subr.bf16.mxu0 %v1036
    %1794 = vmatpush1.bf16.msra.mxu0 %v1035
    %1795 = vmatprep.subr.bf16.mxu0 %v1042
    %1796 = vmatpush1.bf16.msra.mxu0 %v1041
    %1797 = vmatprep.subr.bf16.mxu0 0
    %1798 = vmatpush1.bf16.msra.mxu0 0
    %1799 = vmatprep.subr.bf16.mxu0 0
    %1800 = vmatpush1.bf16.msra.mxu0 0
    %1801 = vmatprep.subr.bf16.mxu0 0
    %1802 = vmatpush1.bf16.msra.mxu0 0
    %1803 = vmatprep.subr.bf16.mxu0 0
    %1804 = vmatpush1.bf16.msra.mxu0 0
    %1805 = vmatprep.subr.bf16.mxu0 0
    %1806 = vmatpush1.bf16.msra.mxu0 0
    %1807 = vmatprep.subr.bf16.mxu0 0
    %1808 = vmatpush1.bf16.msra.mxu0 0
    %1809 = vmatprep.subr.bf16.mxu0 0
    %1810 = vmatpush1.bf16.msra.mxu0 0
    %1811 = vmatprep.subr.bf16.mxu0 0
    %1812 = vmatpush1.bf16.msra.mxu0 0
    %1813 = vmatprep.mubr.bf16.mxu0 0
    %1814 = vmatmul.mubr.bf16.gmra.mrb[0].mxu0 %v1780
    %v1815 = vpop.f32.mrb[0].mxu0
    %v1816 = vadd.f32 %v828, %v1815
    %v1817 = vpop.f32.mrb[0].mxu0
    %v1818 = vadd.f32 %v832, %v1817
    %v1819 = vpop.f32.mrb[0].mxu0
    %v1820 = vpop.f32.mrb[0].mxu0
    %1821 = vdwg.mxu0
    %1822 = vmatprep.subr.bf16.mxu0 %v1002
    %1823 = vmatpush1.bf16.msra.mxu0 %v1001
    %1824 = vmatprep.subr.bf16.mxu0 %v1008
    %1825 = vmatpush1.bf16.msra.mxu0 %v1007
    %1826 = vmatprep.subr.bf16.mxu0 %v1014
    %1827 = vmatpush1.bf16.msra.mxu0 %v1013
    %1828 = vmatprep.subr.bf16.mxu0 %v1020
    %1829 = vmatpush1.bf16.msra.mxu0 %v1019
    %1830 = vmatprep.subr.bf16.mxu0 %v1026
    %1831 = vmatpush1.bf16.msra.mxu0 %v1025
    %1832 = vmatprep.subr.bf16.mxu0 %v1032
    %1833 = vmatpush1.bf16.msra.mxu0 %v1031
    %1834 = vmatprep.subr.bf16.mxu0 %v1038
    %1835 = vmatpush1.bf16.msra.mxu0 %v1037
    %1836 = vmatprep.subr.bf16.mxu0 %v1044
    %1837 = vmatpush1.bf16.msra.mxu0 %v1043
    %1838 = vmatprep.subr.bf16.mxu0 0
    %1839 = vmatpush1.bf16.msra.mxu0 0
    %1840 = vmatprep.subr.bf16.mxu0 0
    %1841 = vmatpush1.bf16.msra.mxu0 0
    %1842 = vmatprep.subr.bf16.mxu0 0
    %1843 = vmatpush1.bf16.msra.mxu0 0
    %1844 = vmatprep.subr.bf16.mxu0 0
    %1845 = vmatpush1.bf16.msra.mxu0 0
    %1846 = vmatprep.subr.bf16.mxu0 0
    %1847 = vmatpush1.bf16.msra.mxu0 0
    %1848 = vmatprep.subr.bf16.mxu0 0
    %1849 = vmatpush1.bf16.msra.mxu0 0
    %1850 = vmatprep.subr.bf16.mxu0 0
    %1851 = vmatpush1.bf16.msra.mxu0 0
    %1852 = vmatprep.subr.bf16.mxu0 0
    %1853 = vmatpush1.bf16.msra.mxu0 0
    %1854 = vmatprep.mubr.bf16.mxu0 0
    %1855 = vmatmul.mubr.bf16.gmra.mrb[0].mxu0 %v1780
    %v1856 = vpop.f32.mrb[0].mxu0
    %v1857 = vadd.f32 %v836, %v1856
    %v1858 = vpop.f32.mrb[0].mxu0
    %v1859 = vadd.f32 %v840, %v1858
    %v1860 = vpop.f32.mrb[0].mxu0
    %v1861 = vpop.f32.mrb[0].mxu0
    %1862 = vdwg.mxu0
    %1863 = vmatprep.subr.bf16.mxu0 %v1004
    %1864 = vmatpush1.bf16.msra.mxu0 %v1003
    %1865 = vmatprep.subr.bf16.mxu0 %v1010
    %1866 = vmatpush1.bf16.msra.mxu0 %v1009
    %1867 = vmatprep.subr.bf16.mxu0 %v1016
    %1868 = vmatpush1.bf16.msra.mxu0 %v1015
    %1869 = vmatprep.subr.bf16.mxu0 %v1022
    %1870 = vmatpush1.bf16.msra.mxu0 %v1021
    %1871 = vmatprep.subr.bf16.mxu0 %v1028
    %1872 = vmatpush1.bf16.msra.mxu0 %v1027
    %1873 = vmatprep.subr.bf16.mxu0 %v1034
    %1874 = vmatpush1.bf16.msra.mxu0 %v1033
    %1875 = vmatprep.subr.bf16.mxu0 %v1040
    %1876 = vmatpush1.bf16.msra.mxu0 %v1039
    %1877 = vmatprep.subr.bf16.mxu0 %v1046
    %1878 = vmatpush1.bf16.msra.mxu0 %v1045
    %1879 = vmatprep.subr.bf16.mxu0 0
    %1880 = vmatpush1.bf16.msra.mxu0 0
    %1881 = vmatprep.subr.bf16.mxu0 0
    %1882 = vmatpush1.bf16.msra.mxu0 0
    %1883 = vmatprep.subr.bf16.mxu0 0
    %1884 = vmatpush1.bf16.msra.mxu0 0
    %1885 = vmatprep.subr.bf16.mxu0 0
    %1886 = vmatpush1.bf16.msra.mxu0 0
    %1887 = vmatprep.subr.bf16.mxu0 0
    %1888 = vmatpush1.bf16.msra.mxu0 0
    %1889 = vmatprep.subr.bf16.mxu0 0
    %1890 = vmatpush1.bf16.msra.mxu0 0
    %1891 = vmatprep.subr.bf16.mxu0 0
    %1892 = vmatpush1.bf16.msra.mxu0 0
    %1893 = vmatprep.subr.bf16.mxu0 0
    %1894 = vmatpush1.bf16.msra.mxu0 0
    %1895 = vmatprep.mubr.bf16.mxu0 0
    %1896 = vmatmul.mubr.bf16.gmra.mrb[0].mxu0 %v1780
    %v1897 = vpop.f32.mrb[0].mxu0
    %v1898 = vadd.f32 %v844, %v1897
    %v1899 = vpop.f32.mrb[0].mxu0
    %v1900 = vadd.f32 %v848, %v1899
    %v1901 = vpop.f32.mrb[0].mxu0
    %v1902 = vpop.f32.mrb[0].mxu0
    %1903 = vdwg.mxu0
    %v1904 = vtanh.pop %v1816
    %v1905 = vtanh.pop %v1818
    %v1906 = vtanh.pop %v1857
    %v1907 = vtanh.pop %v1859
    %v1908 = vtanh.pop %v1898
    %v1909 = vtanh.pop %v1900
    %v1910 = vpack.c.bf16 %v1904, %v1904
    %v1911 = vpack.c.bf16 %v1905, %v1905
    %v1912 = vpack.c.bf16 %v1906, %v1906
    %v1913 = vpack.c.bf16 %v1907, %v1907
    %v1914 = vpack.c.bf16 %v1908, %v1908
    %v1915 = vpack.c.bf16 %v1909, %v1909
    %1916 = vmatprep.subr.bf16.mxu0 0
    %1917 = vmatpush1.bf16.msra.mxu0 %v1518
    %1918 = vmatprep.subr.bf16.mxu0 0
    %1919 = vmatpush1.bf16.msra.mxu0 %v1519
    %1920 = vmatprep.subr.bf16.mxu0 0
    %1921 = vmatpush1.bf16.msra.mxu0 %v1520
    %1922 = vmatprep.subr.bf16.mxu0 0
    %1923 = vmatpush1.bf16.msra.mxu0 %v1521
    %1924 = vmatprep.subr.bf16.mxu0 0
    %1925 = vmatpush1.bf16.msra.mxu0 %v1522
    %1926 = vmatprep.subr.bf16.mxu0 0
    %1927 = vmatpush1.bf16.msra.mxu0 %v1523
    %1928 = vmatprep.subr.bf16.mxu0 0
    %1929 = vmatpush1.bf16.msra.mxu0 %v1524
    %1930 = vmatprep.subr.bf16.mxu0 0
    %1931 = vmatpush1.bf16.msra.mxu0 %v1525
    %1932 = vmatprep.subr.bf16.mxu0 0
    %1933 = vmatpush1.bf16.msra.mxu0 %v1526
    %1934 = vmatprep.subr.bf16.mxu0 0
    %1935 = vmatpush1.bf16.msra.mxu0 %v1527
    %1936 = vmatprep.subr.bf16.mxu0 0
    %1937 = vmatpush1.bf16.msra.mxu0 %v1528
    %1938 = vmatprep.subr.bf16.mxu0 0
    %1939 = vmatpush1.bf16.msra.mxu0 %v1529
    %1940 = vmatprep.subr.bf16.mxu0 0
    %1941 = vmatpush1.bf16.msra.mxu0 %v1530
    %1942 = vmatprep.subr.bf16.mxu0 0
    %1943 = vmatpush1.bf16.msra.mxu0 %v1531
    %1944 = vmatprep.subr.bf16.mxu0 0
    %1945 = vmatpush1.bf16.msra.mxu0 %v1532
    %1946 = vmatprep.subr.bf16.mxu0 0
    %1947 = vmatpush1.bf16.msra.mxu0 %v1533
    %1948 = vmatprep.mubr.bf16.mxu0 %v1911
    %1949 = vmatmul.mubr.bf16.gmra.mrb[0].mxu0 %v1910
    %v1950 = vpop.f32.mrb[0].mxu0
    %v1951 = vadd.f32 0.0, %v1950
    %v1952 = vpop.f32.mrb[0].mxu0
    %v1953 = vpop.f32.mrb[0].mxu0
    %v1954 = vpop.f32.mrb[0].mxu0
    %1955 = vdwg.mxu0
    %1956 = vmatprep.subr.bf16.mxu0 0
    %1957 = vmatpush1.bf16.msra.mxu0 %v1534
    %1958 = vmatprep.subr.bf16.mxu0 0
    %1959 = vmatpush1.bf16.msra.mxu0 %v1535
    %1960 = vmatprep.subr.bf16.mxu0 0
    %1961 = vmatpush1.bf16.msra.mxu0 %v1536
    %1962 = vmatprep.subr.bf16.mxu0 0
    %1963 = vmatpush1.bf16.msra.mxu0 %v1537
    %1964 = vmatprep.subr.bf16.mxu0 0
    %1965 = vmatpush1.bf16.msra.mxu0 %v1538
    %1966 = vmatprep.subr.bf16.mxu0 0
    %1967 = vmatpush1.bf16.msra.mxu0 %v1539
    %1968 = vmatprep.subr.bf16.mxu0 0
    %1969 = vmatpush1.bf16.msra.mxu0 %v1540
    %1970 = vmatprep.subr.bf16.mxu0 0
    %1971 = vmatpush1.bf16.msra.mxu0 %v1541
    %1972 = vmatprep.subr.bf16.mxu0 0
    %1973 = vmatpush1.bf16.msra.mxu0 %v1542
    %1974 = vmatprep.subr.bf16.mxu0 0
    %1975 = vmatpush1.bf16.msra.mxu0 %v1543
    %1976 = vmatprep.subr.bf16.mxu0 0
    %1977 = vmatpush1.bf16.msra.mxu0 %v1544
    %1978 = vmatprep.subr.bf16.mxu0 0
    %1979 = vmatpush1.bf16.msra.mxu0 %v1545
    %1980 = vmatprep.subr.bf16.mxu0 0
    %1981 = vmatpush1.bf16.msra.mxu0 %v1546
    %1982 = vmatprep.subr.bf16.mxu0 0
    %1983 = vmatpush1.bf16.msra.mxu0 %v1547
    %1984 = vmatprep.subr.bf16.mxu0 0
    %1985 = vmatpush1.bf16.msra.mxu0 %v1548
    %1986 = vmatprep.subr.bf16.mxu0 0
    %1987 = vmatpush1.bf16.msra.mxu0 %v1549
    %1988 = vmatprep.mubr.bf16.mxu0 %v1913
    %1989 = vmatmul.mubr.bf16.gmra.mrb[0].mxu0 %v1912
    %v1990 = vpop.f32.mrb[0].mxu0
    %v1991 = vadd.f32 %v1951, %v1990
    %v1992 = vpop.f32.mrb[0].mxu0
    %v1993 = vpop.f32.mrb[0].mxu0
    %v1994 = vpop.f32.mrb[0].mxu0
    %1995 = vdwg.mxu0
    %1996 = vmatprep.subr.bf16.mxu0 0
    %1997 = vmatpush1.bf16.msra.mxu0 %v1550
    %1998 = vmatprep.subr.bf16.mxu0 0
    %1999 = vmatpush1.bf16.msra.mxu0 %v1551
    %2000 = vmatprep.subr.bf16.mxu0 0
    %2001 = vmatpush1.bf16.msra.mxu0 %v1552
    %2002 = vmatprep.subr.bf16.mxu0 0
    %2003 = vmatpush1.bf16.msra.mxu0 %v1553
    %2004 = vmatprep.subr.bf16.mxu0 0
    %2005 = vmatpush1.bf16.msra.mxu0 %v1554
    %2006 = vmatprep.subr.bf16.mxu0 0
    %2007 = vmatpush1.bf16.msra.mxu0 %v1555
    %2008 = vmatprep.subr.bf16.mxu0 0
    %2009 = vmatpush1.bf16.msra.mxu0 %v1556
    %2010 = vmatprep.subr.bf16.mxu0 0
    %2011 = vmatpush1.bf16.msra.mxu0 %v1557
    %2012 = vmatprep.subr.bf16.mxu0 0
    %2013 = vmatpush1.bf16.msra.mxu0 %v1558
    %2014 = vmatprep.subr.bf16.mxu0 0
    %2015 = vmatpush1.bf16.msra.mxu0 %v1559
    %2016 = vmatprep.subr.bf16.mxu0 0
    %2017 = vmatpush1.bf16.msra.mxu0 %v1560
    %2018 = vmatprep.subr.bf16.mxu0 0
    %2019 = vmatpush1.bf16.msra.mxu0 %v1561
    %2020 = vmatprep.subr.bf16.mxu0 0
    %2021 = vmatpush1.bf16.msra.mxu0 %v1562
    %2022 = vmatprep.subr.bf16.mxu0 0
    %2023 = vmatpush1.bf16.msra.mxu0 %v1563
    %2024 = vmatprep.subr.bf16.mxu0 0
    %2025 = vmatpush1.bf16.msra.mxu0 %v1564
    %2026 = vmatprep.subr.bf16.mxu0 0
    %2027 = vmatpush1.bf16.msra.mxu0 %v1565
    %2028 = vmatprep.mubr.bf16.mxu0 %v1915
    %2029 = vmatmul.mubr.bf16.gmra.mrb[0].mxu0 %v1914
    %v2030 = vpop.f32.mrb[0].mxu0
    %v2031 = vadd.f32 %v1991, %v2030
    %v2032 = vpop.f32.mrb[0].mxu0
    %v2033 = vpop.f32.mrb[0].mxu0
    %v2034 = vpop.f32.mrb[0].mxu0
    %2035 = vdwg.mxu0
    %v2036 = vadd.f32 %v638, %v2031
    %v2037 = vmax.f32 %v2036, 0.0
    %v2038 = vpack.c.bf16 %v2037, %v2037
    %2039 = vmatprep.subr.bf16.mxu0 0
    %2040 = vmatpush1.bf16.msra.mxu0 %v710
    %2041 = vmatprep.subr.bf16.mxu0 0
    %2042 = vmatpush1.bf16.msra.mxu0 %v711
    %2043 = vmatprep.subr.bf16.mxu0 0
    %2044 = vmatpush1.bf16.msra.mxu0 %v712
    %2045 = vmatprep.subr.bf16.mxu0 0
    %2046 = vmatpush1.bf16.msra.mxu0 %v713
    %2047 = vmatprep.subr.bf16.mxu0 0
    %2048 = vmatpush1.bf16.msra.mxu0 %v714
    %2049 = vmatprep.subr.bf16.mxu0 0
    %2050 = vmatpush1.bf16.msra.mxu0 %v715
    %2051 = vmatprep.subr.bf16.mxu0 0
    %2052 = vmatpush1.bf16.msra.mxu0 %v716
    %2053 = vmatprep.subr.bf16.mxu0 0
    %2054 = vmatpush1.bf16.msra.mxu0 %v717
    %2055 = vmatprep.subr.bf16.mxu0 0
    %2056 = vmatpush1.bf16.msra.mxu0 0
    %2057 = vmatprep.subr.bf16.mxu0 0
    %2058 = vmatpush1.bf16.msra.mxu0 0
    %2059 = vmatprep.subr.bf16.mxu0 0
    %2060 = vmatpush1.bf16.msra.mxu0 0
    %2061 = vmatprep.subr.bf16.mxu0 0
    %2062 = vmatpush1.bf16.msra.mxu0 0
    %2063 = vmatprep.subr.bf16.mxu0 0
    %2064 = vmatpush1.bf16.msra.mxu0 0
    %2065 = vmatprep.subr.bf16.mxu0 0
    %2066 = vmatpush1.bf16.msra.mxu0 0
    %2067 = vmatprep.subr.bf16.mxu0 0
    %2068 = vmatpush1.bf16.msra.mxu0 0
    %2069 = vmatprep.subr.bf16.mxu0 0
    %2070 = vmatpush1.bf16.msra.mxu0 0
    %2071 = vmatprep.mubr.bf16.mxu0 0
    %2072 = vmatmul.mubr.bf16.gmra.mrb[0].mxu0 %v2038
    %v2073 = vpop.f32.mrb[0].mxu0
    %v2074 = vadd.f32 0.0, %v2073
    %v2075 = vpop.f32.mrb[0].mxu0
    %v2076 = vpop.f32.mrb[0].mxu0
    %v2077 = vpop.f32.mrb[0].mxu0
    %2078 = vdwg.mxu0
    %v2079 = vadd.f32 %v1778, %v2074
    %v2080 = vadd.f32 %v2079, %v771
    %v2081 = vmax.f32 %v2080, 0.0
    %v2082 = vpack.c.bf16 %v2081, %v2081
    %2083 = vmatprep.subr.bf16.mxu0 %v1000
    %2084 = vmatpush1.bf16.msra.mxu0 %v999
    %2085 = vmatprep.subr.bf16.mxu0 %v1006
    %2086 = vmatpush1.bf16.msra.mxu0 %v1005
    %2087 = vmatprep.subr.bf16.mxu0 %v1012
    %2088 = vmatpush1.bf16.msra.mxu0 %v1011
    %2089 = vmatprep.subr.bf16.mxu0 %v1018
    %2090 = vmatpush1.bf16.msra.mxu0 %v1017
    %2091 = vmatprep.subr.bf16.mxu0 %v1024
    %2092 = vmatpush1.bf16.msra.mxu0 %v1023
    %2093 = vmatprep.subr.bf16.mxu0 %v1030
    %2094 = vmatpush1.bf16.msra.mxu0 %v1029
    %2095 = vmatprep.subr.bf16.mxu0 %v1036
    %2096 = vmatpush1.bf16.msra.mxu0 %v1035
    %2097 = vmatprep.subr.bf16.mxu0 %v1042
    %2098 = vmatpush1.bf16.msra.mxu0 %v1041
    %2099 = vmatprep.subr.bf16.mxu0 0
    %2100 = vmatpush1.bf16.msra.mxu0 0
    %2101 = vmatprep.subr.bf16.mxu0 0
    %2102 = vmatpush1.bf16.msra.mxu0 0
    %2103 = vmatprep.subr.bf16.mxu0 0
    %2104 = vmatpush1.bf16.msra.mxu0 0
    %2105 = vmatprep.subr.bf16.mxu0 0
    %2106 = vmatpush1.bf16.msra.mxu0 0
    %2107 = vmatprep.subr.bf16.mxu0 0
    %2108 = vmatpush1.bf16.msra.mxu0 0
    %2109 = vmatprep.subr.bf16.mxu0 0
    %2110 = vmatpush1.bf16.msra.mxu0 0
    %2111 = vmatprep.subr.bf16.mxu0 0
    %2112 = vmatpush1.bf16.msra.mxu0 0
    %2113 = vmatprep.subr.bf16.mxu0 0
    %2114 = vmatpush1.bf16.msra.mxu0 0
    %2115 = vmatprep.mubr.bf16.mxu0 0
    %2116 = vmatmul.mubr.bf16.gmra.mrb[0].mxu0 %v2082
    %v2117 = vpop.f32.mrb[0].mxu0
    %v2118 = vadd.f32 %v828, %v2117
    %v2119 = vpop.f32.mrb[0].mxu0
    %v2120 = vadd.f32 %v832, %v2119
    %v2121 = vpop.f32.mrb[0].mxu0
    %v2122 = vpop.f32.mrb[0].mxu0
    %2123 = vdwg.mxu0
    %2124 = vmatprep.subr.bf16.mxu0 %v1002
    %2125 = vmatpush1.bf16.msra.mxu0 %v1001
    %2126 = vmatprep.subr.bf16.mxu0 %v1008
    %2127 = vmatpush1.bf16.msra.mxu0 %v1007
    %2128 = vmatprep.subr.bf16.mxu0 %v1014
    %2129 = vmatpush1.bf16.msra.mxu0 %v1013
    %2130 = vmatprep.subr.bf16.mxu0 %v1020
    %2131 = vmatpush1.bf16.msra.mxu0 %v1019
    %2132 = vmatprep.subr.bf16.mxu0 %v1026
    %2133 = vmatpush1.bf16.msra.mxu0 %v1025
    %2134 = vmatprep.subr.bf16.mxu0 %v1032
    %2135 = vmatpush1.bf16.msra.mxu0 %v1031
    %2136 = vmatprep.subr.bf16.mxu0 %v1038
    %2137 = vmatpush1.bf16.msra.mxu0 %v1037
    %2138 = vmatprep.subr.bf16.mxu0 %v1044
    %2139 = vmatpush1.bf16.msra.mxu0 %v1043
    %2140 = vmatprep.subr.bf16.mxu0 0
    %2141 = vmatpush1.bf16.msra.mxu0 0
    %2142 = vmatprep.subr.bf16.mxu0 0
    %2143 = vmatpush1.bf16.msra.mxu0 0
    %2144 = vmatprep.subr.bf16.mxu0 0
    %2145 = vmatpush1.bf16.msra.mxu0 0
    %2146 = vmatprep.subr.bf16.mxu0 0
    %2147 = vmatpush1.bf16.msra.mxu0 0
    %2148 = vmatprep.subr.bf16.mxu0 0
    %2149 = vmatpush1.bf16.msra.mxu0 0
    %2150 = vmatprep.subr.bf16.mxu0 0
    %2151 = vmatpush1.bf16.msra.mxu0 0
    %2152 = vmatprep.subr.bf16.mxu0 0
    %2153 = vmatpush1.bf16.msra.mxu0 0
    %2154 = vmatprep.subr.bf16.mxu0 0
    %2155 = vmatpush1.bf16.msra.mxu0 0
    %2156 = vmatprep.mubr.bf16.mxu0 0
    %2157 = vmatmul.mubr.bf16.gmra.mrb[0].mxu0 %v2082
    %v2158 = vpop.f32.mrb[0].mxu0
    %v2159 = vadd.f32 %v836, %v2158
    %v2160 = vpop.f32.mrb[0].mxu0
    %v2161 = vadd.f32 %v840, %v2160
    %v2162 = vpop.f32.mrb[0].mxu0
    %v2163 = vpop.f32.mrb[0].mxu0
    %2164 = vdwg.mxu0
    %2165 = vmatprep.subr.bf16.mxu0 %v1004
    %2166 = vmatpush1.bf16.msra.mxu0 %v1003
    %2167 = vmatprep.subr.bf16.mxu0 %v1010
    %2168 = vmatpush1.bf16.msra.mxu0 %v1009
    %2169 = vmatprep.subr.bf16.mxu0 %v1016
    %2170 = vmatpush1.bf16.msra.mxu0 %v1015
    %2171 = vmatprep.subr.bf16.mxu0 %v1022
    %2172 = vmatpush1.bf16.msra.mxu0 %v1021
    %2173 = vmatprep.subr.bf16.mxu0 %v1028
    %2174 = vmatpush1.bf16.msra.mxu0 %v1027
    %2175 = vmatprep.subr.bf16.mxu0 %v1034
    %2176 = vmatpush1.bf16.msra.mxu0 %v1033
    %2177 = vmatprep.subr.bf16.mxu0 %v1040
    %2178 = vmatpush1.bf16.msra.mxu0 %v1039
    %2179 = vmatprep.subr.bf16.mxu0 %v1046
    %2180 = vmatpush1.bf16.msra.mxu0 %v1045
    %2181 = vmatprep.subr.bf16.mxu0 0
    %2182 = vmatpush1.bf16.msra.mxu0 0
    %2183 = vmatprep.subr.bf16.mxu0 0
    %2184 = vmatpush1.bf16.msra.mxu0 0
    %2185 = vmatprep.subr.bf16.mxu0 0
    %2186 = vmatpush1.bf16.msra.mxu0 0
    %2187 = vmatprep.subr.bf16.mxu0 0
    %2188 = vmatpush1.bf16.msra.mxu0 0
    %2189 = vmatprep.subr.bf16.mxu0 0
    %2190 = vmatpush1.bf16.msra.mxu0 0
    %2191 = vmatprep.subr.bf16.mxu0 0
    %2192 = vmatpush1.bf16.msra.mxu0 0
    %2193 = vmatprep.subr.bf16.mxu0 0
    %2194 = vmatpush1.bf16.msra.mxu0 0
    %2195 = vmatprep.subr.bf16.mxu0 0
    %2196 = vmatpush1.bf16.msra.mxu0 0
    %2197 = vmatprep.mubr.bf16.mxu0 0
    %2198 = vmatmul.mubr.bf16.gmra.mrb[0].mxu0 %v2082
    %v2199 = vpop.f32.mrb[0].mxu0
    %v2200 = vadd.f32 %v844, %v2199
    %v2201 = vpop.f32.mrb[0].mxu0
    %v2202 = vadd.f32 %v848, %v2201
    %v2203 = vpop.f32.mrb[0].mxu0
    %v2204 = vpop.f32.mrb[0].mxu0
    %2205 = vdwg.mxu0
    %v2206 = vtanh.pop %v2118
    %v2207 = vtanh.pop %v2120
    %v2208 = vtanh.pop %v2159
    %v2209 = vtanh.pop %v2161
    %v2210 = vtanh.pop %v2200
    %v2211 = vtanh.pop %v2202
    %v2212 = vpack.c.bf16 %v2206, %v2206
    %v2213 = vpack.c.bf16 %v2207, %v2207
    %v2214 = vpack.c.bf16 %v2208, %v2208
    %v2215 = vpack.c.bf16 %v2209, %v2209
    %v2216 = vpack.c.bf16 %v2210, %v2210
    %v2217 = vpack.c.bf16 %v2211, %v2211
    %2218 = vmatprep.subr.bf16.mxu0 0
    %2219 = vmatpush1.bf16.msra.mxu0 %v1518
    %2220 = vmatprep.subr.bf16.mxu0 0
    %2221 = vmatpush1.bf16.msra.mxu0 %v1519
    %2222 = vmatprep.subr.bf16.mxu0 0
    %2223 = vmatpush1.bf16.msra.mxu0 %v1520
    %2224 = vmatprep.subr.bf16.mxu0 0
    %2225 = vmatpush1.bf16.msra.mxu0 %v1521
    %2226 = vmatprep.subr.bf16.mxu0 0
    %2227 = vmatpush1.bf16.msra.mxu0 %v1522
    %2228 = vmatprep.subr.bf16.mxu0 0
    %2229 = vmatpush1.bf16.msra.mxu0 %v1523
    %2230 = vmatprep.subr.bf16.mxu0 0
    %2231 = vmatpush1.bf16.msra.mxu0 %v1524
    %2232 = vmatprep.subr.bf16.mxu0 0
    %2233 = vmatpush1.bf16.msra.mxu0 %v1525
    %2234 = vmatprep.subr.bf16.mxu0 0
    %2235 = vmatpush1.bf16.msra.mxu0 %v1526
    %2236 = vmatprep.subr.bf16.mxu0 0
    %2237 = vmatpush1.bf16.msra.mxu0 %v1527
    %2238 = vmatprep.subr.bf16.mxu0 0
    %2239 = vmatpush1.bf16.msra.mxu0 %v1528
    %2240 = vmatprep.subr.bf16.mxu0 0
    %2241 = vmatpush1.bf16.msra.mxu0 %v1529
    %2242 = vmatprep.subr.bf16.mxu0 0
    %2243 = vmatpush1.bf16.msra.mxu0 %v1530
    %2244 = vmatprep.subr.bf16.mxu0 0
    %2245 = vmatpush1.bf16.msra.mxu0 %v1531
    %2246 = vmatprep.subr.bf16.mxu0 0
    %2247 = vmatpush1.bf16.msra.mxu0 %v1532
    %2248 = vmatprep.subr.bf16.mxu0 0
    %2249 = vmatpush1.bf16.msra.mxu0 %v1533
    %2250 = vmatprep.mubr.bf16.mxu0 %v2213
    %2251 = vmatmul.mubr.bf16.gmra.mrb[0].mxu0 %v2212
    %v2252 = vpop.f32.mrb[0].mxu0
    %v2253 = vadd.f32 0.0, %v2252
    %v2254 = vpop.f32.mrb[0].mxu0
    %v2255 = vpop.f32.mrb[0].mxu0
    %v2256 = vpop.f32.mrb[0].mxu0
    %2257 = vdwg.mxu0
    %2258 = vmatprep.subr.bf16.mxu0 0
    %2259 = vmatpush1.bf16.msra.mxu0 %v1534
    %2260 = vmatprep.subr.bf16.mxu0 0
    %2261 = vmatpush1.bf16.msra.mxu0 %v1535
    %2262 = vmatprep.subr.bf16.mxu0 0
    %2263 = vmatpush1.bf16.msra.mxu0 %v1536
    %2264 = vmatprep.subr.bf16.mxu0 0
    %2265 = vmatpush1.bf16.msra.mxu0 %v1537
    %2266 = vmatprep.subr.bf16.mxu0 0
    %2267 = vmatpush1.bf16.msra.mxu0 %v1538
    %2268 = vmatprep.subr.bf16.mxu0 0
    %2269 = vmatpush1.bf16.msra.mxu0 %v1539
    %2270 = vmatprep.subr.bf16.mxu0 0
    %2271 = vmatpush1.bf16.msra.mxu0 %v1540
    %2272 = vmatprep.subr.bf16.mxu0 0
    %2273 = vmatpush1.bf16.msra.mxu0 %v1541
    %2274 = vmatprep.subr.bf16.mxu0 0
    %2275 = vmatpush1.bf16.msra.mxu0 %v1542
    %2276 = vmatprep.subr.bf16.mxu0 0
    %2277 = vmatpush1.bf16.msra.mxu0 %v1543
    %2278 = vmatprep.subr.bf16.mxu0 0
    %2279 = vmatpush1.bf16.msra.mxu0 %v1544
    %2280 = vmatprep.subr.bf16.mxu0 0
    %2281 = vmatpush1.bf16.msra.mxu0 %v1545
    %2282 = vmatprep.subr.bf16.mxu0 0
    %2283 = vmatpush1.bf16.msra.mxu0 %v1546
    %2284 = vmatprep.subr.bf16.mxu0 0
    %2285 = vmatpush1.bf16.msra.mxu0 %v1547
    %2286 = vmatprep.subr.bf16.mxu0 0
    %2287 = vmatpush1.bf16.msra.mxu0 %v1548
    %2288 = vmatprep.subr.bf16.mxu0 0
    %2289 = vmatpush1.bf16.msra.mxu0 %v1549
    %2290 = vmatprep.mubr.bf16.mxu0 %v2215
    %2291 = vmatmul.mubr.bf16.gmra.mrb[0].mxu0 %v2214
    %v2292 = vpop.f32.mrb[0].mxu0
    %v2293 = vadd.f32 %v2253, %v2292
    %v2294 = vpop.f32.mrb[0].mxu0
    %v2295 = vpop.f32.mrb[0].mxu0
    %v2296 = vpop.f32.mrb[0].mxu0
    %2297 = vdwg.mxu0
    %2298 = vmatprep.subr.bf16.mxu0 0
    %2299 = vmatpush1.bf16.msra.mxu0 %v1550
    %2300 = vmatprep.subr.bf16.mxu0 0
    %2301 = vmatpush1.bf16.msra.mxu0 %v1551
    %2302 = vmatprep.subr.bf16.mxu0 0
    %2303 = vmatpush1.bf16.msra.mxu0 %v1552
    %2304 = vmatprep.subr.bf16.mxu0 0
    %2305 = vmatpush1.bf16.msra.mxu0 %v1553
    %2306 = vmatprep.subr.bf16.mxu0 0
    %2307 = vmatpush1.bf16.msra.mxu0 %v1554
    %2308 = vmatprep.subr.bf16.mxu0 0
    %2309 = vmatpush1.bf16.msra.mxu0 %v1555
    %2310 = vmatprep.subr.bf16.mxu0 0
    %2311 = vmatpush1.bf16.msra.mxu0 %v1556
    %2312 = vmatprep.subr.bf16.mxu0 0
    %2313 = vmatpush1.bf16.msra.mxu0 %v1557
    %2314 = vmatprep.subr.bf16.mxu0 0
    %2315 = vmatpush1.bf16.msra.mxu0 %v1558
    %2316 = vmatprep.subr.bf16.mxu0 0
    %2317 = vmatpush1.bf16.msra.mxu0 %v1559
    %2318 = vmatprep.subr.bf16.mxu0 0
    %2319 = vmatpush1.bf16.msra.mxu0 %v1560
    %2320 = vmatprep.subr.bf16.mxu0 0
    %2321 = vmatpush1.bf16.msra.mxu0 %v1561
    %2322 = vmatprep.subr.bf16.mxu0 0
    %2323 = vmatpush1.bf16.msra.mxu0 %v1562
    %2324 = vmatprep.subr.bf16.mxu0 0
    %2325 = vmatpush1.bf16.msra.mxu0 %v1563
    %2326 = vmatprep.subr.bf16.mxu0 0
    %2327 = vmatpush1.bf16.msra.mxu0 %v1564
    %2328 = vmatprep.subr.bf16.mxu0 0
    %2329 = vmatpush1.bf16.msra.mxu0 %v1565
    %2330 = vmatprep.mubr.bf16.mxu0 %v2217
    %2331 = vmatmul.mubr.bf16.gmra.mrb[0].mxu0 %v2216
    %v2332 = vpop.f32.mrb[0].mxu0
    %v2333 = vadd.f32 %v2293, %v2332
    %v2334 = vpop.f32.mrb[0].mxu0
    %v2335 = vpop.f32.mrb[0].mxu0
    %v2336 = vpop.f32.mrb[0].mxu0
    %2337 = vdwg.mxu0
    %v2338 = vadd.f32 %v638, %v2333
    %v2339 = vmax.f32 %v2338, 0.0
    %v2340 = vpack.c.bf16 %v2339, %v2339
    %2341 = vmatprep.subr.bf16.mxu0 0
    %2342 = vmatpush1.bf16.msra.mxu0 %v710
    %2343 = vmatprep.subr.bf16.mxu0 0
    %2344 = vmatpush1.bf16.msra.mxu0 %v711
    %2345 = vmatprep.subr.bf16.mxu0 0
    %2346 = vmatpush1.bf16.msra.mxu0 %v712
    %2347 = vmatprep.subr.bf16.mxu0 0
    %2348 = vmatpush1.bf16.msra.mxu0 %v713
    %2349 = vmatprep.subr.bf16.mxu0 0
    %2350 = vmatpush1.bf16.msra.mxu0 %v714
    %2351 = vmatprep.subr.bf16.mxu0 0
    %2352 = vmatpush1.bf16.msra.mxu0 %v715
    %2353 = vmatprep.subr.bf16.mxu0 0
    %2354 = vmatpush1.bf16.msra.mxu0 %v716
    %2355 = vmatprep.subr.bf16.mxu0 0
    %2356 = vmatpush1.bf16.msra.mxu0 %v717
    %2357 = vmatprep.subr.bf16.mxu0 0
    %2358 = vmatpush1.bf16.msra.mxu0 0
    %2359 = vmatprep.subr.bf16.mxu0 0
    %2360 = vmatpush1.bf16.msra.mxu0 0
    %2361 = vmatprep.subr.bf16.mxu0 0
    %2362 = vmatpush1.bf16.msra.mxu0 0
    %2363 = vmatprep.subr.bf16.mxu0 0
    %2364 = vmatpush1.bf16.msra.mxu0 0
    %2365 = vmatprep.subr.bf16.mxu0 0
    %2366 = vmatpush1.bf16.msra.mxu0 0
    %2367 = vmatprep.subr.bf16.mxu0 0
    %2368 = vmatpush1.bf16.msra.mxu0 0
    %2369 = vmatprep.subr.bf16.mxu0 0
    %2370 = vmatpush1.bf16.msra.mxu0 0
    %2371 = vmatprep.subr.bf16.mxu0 0
    %2372 = vmatpush1.bf16.msra.mxu0 0
    %2373 = vmatprep.mubr.bf16.mxu0 0
    %2374 = vmatmul.mubr.bf16.gmra.mrb[0].mxu0 %v2340
    %v2375 = vpop.f32.mrb[0].mxu0
    %v2376 = vadd.f32 0.0, %v2375
    %v2377 = vpop.f32.mrb[0].mxu0
    %v2378 = vpop.f32.mrb[0].mxu0
    %v2379 = vpop.f32.mrb[0].mxu0
    %2380 = vdwg.mxu0
    %v2381 = vadd.f32 %v2080, %v2376
    %v2382 = vadd.f32 %v2381, %v771
    %v2383 = vmax.f32 %v2382, 0.0
    %v2384 = vpack.c.bf16 %v2383, %v2383
    %2385 = vmatprep.subr.bf16.mxu0 %v1000
    %2386 = vmatpush1.bf16.msra.mxu0 %v999
    %2387 = vmatprep.subr.bf16.mxu0 %v1006
    %2388 = vmatpush1.bf16.msra.mxu0 %v1005
    %2389 = vmatprep.subr.bf16.mxu0 %v1012
    %2390 = vmatpush1.bf16.msra.mxu0 %v1011
    %2391 = vmatprep.subr.bf16.mxu0 %v1018
    %2392 = vmatpush1.bf16.msra.mxu0 %v1017
    %2393 = vmatprep.subr.bf16.mxu0 %v1024
    %2394 = vmatpush1.bf16.msra.mxu0 %v1023
    %2395 = vmatprep.subr.bf16.mxu0 %v1030
    %2396 = vmatpush1.bf16.msra.mxu0 %v1029
    %2397 = vmatprep.subr.bf16.mxu0 %v1036
    %2398 = vmatpush1.bf16.msra.mxu0 %v1035
    %2399 = vmatprep.subr.bf16.mxu0 %v1042
    %2400 = vmatpush1.bf16.msra.mxu0 %v1041
    %2401 = vmatprep.subr.bf16.mxu0 0
    %2402 = vmatpush1.bf16.msra.mxu0 0
    %2403 = vmatprep.subr.bf16.mxu0 0
    %2404 = vmatpush1.bf16.msra.mxu0 0
    %2405 = vmatprep.subr.bf16.mxu0 0
    %2406 = vmatpush1.bf16.msra.mxu0 0
    %2407 = vmatprep.subr.bf16.mxu0 0
    %2408 = vmatpush1.bf16.msra.mxu0 0
    %2409 = vmatprep.subr.bf16.mxu0 0
    %2410 = vmatpush1.bf16.msra.mxu0 0
    %2411 = vmatprep.subr.bf16.mxu0 0
    %2412 = vmatpush1.bf16.msra.mxu0 0
    %2413 = vmatprep.subr.bf16.mxu0 0
    %2414 = vmatpush1.bf16.msra.mxu0 0
    %2415 = vmatprep.subr.bf16.mxu0 0
    %2416 = vmatpush1.bf16.msra.mxu0 0
    %2417 = vmatprep.mubr.bf16.mxu0 0
    %2418 = vmatmul.mubr.bf16.gmra.mrb[0].mxu0 %v2384
    %v2419 = vpop.f32.mrb[0].mxu0
    %v2420 = vadd.f32 %v828, %v2419
    %v2421 = vpop.f32.mrb[0].mxu0
    %v2422 = vadd.f32 %v832, %v2421
    %v2423 = vpop.f32.mrb[0].mxu0
    %v2424 = vpop.f32.mrb[0].mxu0
    %2425 = vdwg.mxu0
    %2426 = vmatprep.subr.bf16.mxu0 %v1002
    %2427 = vmatpush1.bf16.msra.mxu0 %v1001
    %2428 = vmatprep.subr.bf16.mxu0 %v1008
    %2429 = vmatpush1.bf16.msra.mxu0 %v1007
    %2430 = vmatprep.subr.bf16.mxu0 %v1014
    %2431 = vmatpush1.bf16.msra.mxu0 %v1013
    %2432 = vmatprep.subr.bf16.mxu0 %v1020
    %2433 = vmatpush1.bf16.msra.mxu0 %v1019
    %2434 = vmatprep.subr.bf16.mxu0 %v1026
    %2435 = vmatpush1.bf16.msra.mxu0 %v1025
    %2436 = vmatprep.subr.bf16.mxu0 %v1032
    %2437 = vmatpush1.bf16.msra.mxu0 %v1031
    %2438 = vmatprep.subr.bf16.mxu0 %v1038
    %2439 = vmatpush1.bf16.msra.mxu0 %v1037
    %2440 = vmatprep.subr.bf16.mxu0 %v1044
    %2441 = vmatpush1.bf16.msra.mxu0 %v1043
    %2442 = vmatprep.subr.bf16.mxu0 0
    %2443 = vmatpush1.bf16.msra.mxu0 0
    %2444 = vmatprep.subr.bf16.mxu0 0
    %2445 = vmatpush1.bf16.msra.mxu0 0
    %2446 = vmatprep.subr.bf16.mxu0 0
    %2447 = vmatpush1.bf16.msra.mxu0 0
    %2448 = vmatprep.subr.bf16.mxu0 0
    %2449 = vmatpush1.bf16.msra.mxu0 0
    %2450 = vmatprep.subr.bf16.mxu0 0
    %2451 = vmatpush1.bf16.msra.mxu0 0
    %2452 = vmatprep.subr.bf16.mxu0 0
    %2453 = vmatpush1.bf16.msra.mxu0 0
    %2454 = vmatprep.subr.bf16.mxu0 0
    %2455 = vmatpush1.bf16.msra.mxu0 0
    %2456 = vmatprep.subr.bf16.mxu0 0
    %2457 = vmatpush1.bf16.msra.mxu0 0
    %2458 = vmatprep.mubr.bf16.mxu0 0
    %2459 = vmatmul.mubr.bf16.gmra.mrb[0].mxu0 %v2384
    %v2460 = vpop.f32.mrb[0].mxu0
    %v2461 = vadd.f32 %v836, %v2460
    %v2462 = vpop.f32.mrb[0].mxu0
    %v2463 = vadd.f32 %v840, %v2462
    %v2464 = vpop.f32.mrb[0].mxu0
    %v2465 = vpop.f32.mrb[0].mxu0
    %2466 = vdwg.mxu0
    %2467 = vmatprep.subr.bf16.mxu0 %v1004
    %2468 = vmatpush1.bf16.msra.mxu0 %v1003
    %2469 = vmatprep.subr.bf16.mxu0 %v1010
    %2470 = vmatpush1.bf16.msra.mxu0 %v1009
    %2471 = vmatprep.subr.bf16.mxu0 %v1016
    %2472 = vmatpush1.bf16.msra.mxu0 %v1015
    %2473 = vmatprep.subr.bf16.mxu0 %v1022
    %2474 = vmatpush1.bf16.msra.mxu0 %v1021
    %2475 = vmatprep.subr.bf16.mxu0 %v1028
    %2476 = vmatpush1.bf16.msra.mxu0 %v1027
    %2477 = vmatprep.subr.bf16.mxu0 %v1034
    %2478 = vmatpush1.bf16.msra.mxu0 %v1033
    %2479 = vmatprep.subr.bf16.mxu0 %v1040
    %2480 = vmatpush1.bf16.msra.mxu0 %v1039
    %2481 = vmatprep.subr.bf16.mxu0 %v1046
    %2482 = vmatpush1.bf16.msra.mxu0 %v1045
    %2483 = vmatprep.subr.bf16.mxu0 0
    %2484 = vmatpush1.bf16.msra.mxu0 0
    %2485 = vmatprep.subr.bf16.mxu0 0
    %2486 = vmatpush1.bf16.msra.mxu0 0
    %2487 = vmatprep.subr.bf16.mxu0 0
    %2488 = vmatpush1.bf16.msra.mxu0 0
    %2489 = vmatprep.subr.bf16.mxu0 0
    %2490 = vmatpush1.bf16.msra.mxu0 0
    %2491 = vmatprep.subr.bf16.mxu0 0
    %2492 = vmatpush1.bf16.msra.mxu0 0
    %2493 = vmatprep.subr.bf16.mxu0 0
    %2494 = vmatpush1.bf16.msra.mxu0 0
    %2495 = vmatprep.subr.bf16.mxu0 0
    %2496 = vmatpush1.bf16.msra.mxu0 0
    %2497 = vmatprep.subr.bf16.mxu0 0
    %2498 = vmatpush1.bf16.msra.mxu0 0
    %2499 = vmatprep.mubr.bf16.mxu0 0
    %2500 = vmatmul.mubr.bf16.gmra.mrb[0].mxu0 %v2384
    %v2501 = vpop.f32.mrb[0].mxu0
    %v2502 = vadd.f32 %v844, %v2501
    %v2503 = vpop.f32.mrb[0].mxu0
    %v2504 = vadd.f32 %v848, %v2503
    %v2505 = vpop.f32.mrb[0].mxu0
    %v2506 = vpop.f32.mrb[0].mxu0
    %2507 = vdwg.mxu0
    %v2508 = vtanh.pop %v2420
    %v2509 = vtanh.pop %v2422
    %v2510 = vtanh.pop %v2461
    %v2511 = vtanh.pop %v2463
    %v2512 = vtanh.pop %v2502
    %v2513 = vtanh.pop %v2504
    %v2514 = vpack.c.bf16 %v2508, %v2508
    %v2515 = vpack.c.bf16 %v2509, %v2509
    %v2516 = vpack.c.bf16 %v2510, %v2510
    %v2517 = vpack.c.bf16 %v2511, %v2511
    %v2518 = vpack.c.bf16 %v2512, %v2512
    %v2519 = vpack.c.bf16 %v2513, %v2513
    %2520 = vmatprep.subr.bf16.mxu0 0
    %2521 = vmatpush1.bf16.msra.mxu0 %v1518
    %2522 = vmatprep.subr.bf16.mxu0 0
    %2523 = vmatpush1.bf16.msra.mxu0 %v1519
    %2524 = vmatprep.subr.bf16.mxu0 0
    %2525 = vmatpush1.bf16.msra.mxu0 %v1520
    %2526 = vmatprep.subr.bf16.mxu0 0
    %2527 = vmatpush1.bf16.msra.mxu0 %v1521
    %2528 = vmatprep.subr.bf16.mxu0 0
    %2529 = vmatpush1.bf16.msra.mxu0 %v1522
    %2530 = vmatprep.subr.bf16.mxu0 0
    %2531 = vmatpush1.bf16.msra.mxu0 %v1523
    %2532 = vmatprep.subr.bf16.mxu0 0
    %2533 = vmatpush1.bf16.msra.mxu0 %v1524
    %2534 = vmatprep.subr.bf16.mxu0 0
    %2535 = vmatpush1.bf16.msra.mxu0 %v1525
    %2536 = vmatprep.subr.bf16.mxu0 0
    %2537 = vmatpush1.bf16.msra.mxu0 %v1526
    %2538 = vmatprep.subr.bf16.mxu0 0
    %2539 = vmatpush1.bf16.msra.mxu0 %v1527
    %2540 = vmatprep.subr.bf16.mxu0 0
    %2541 = vmatpush1.bf16.msra.mxu0 %v1528
    %2542 = vmatprep.subr.bf16.mxu0 0
    %2543 = vmatpush1.bf16.msra.mxu0 %v1529
    %2544 = vmatprep.subr.bf16.mxu0 0
    %2545 = vmatpush1.bf16.msra.mxu0 %v1530
    %2546 = vmatprep.subr.bf16.mxu0 0
    %2547 = vmatpush1.bf16.msra.mxu0 %v1531
    %2548 = vmatprep.subr.bf16.mxu0 0
    %2549 = vmatpush1.bf16.msra.mxu0 %v1532
    %2550 = vmatprep.subr.bf16.mxu0 0
    %2551 = vmatpush1.bf16.msra.mxu0 %v1533
    %2552 = vmatprep.mubr.bf16.mxu0 %v2515
    %2553 = vmatmul.mubr.bf16.gmra.mrb[0].mxu0 %v2514
    %v2554 = vpop.f32.mrb[0].mxu0
    %v2555 = vadd.f32 0.0, %v2554
    %v2556 = vpop.f32.mrb[0].mxu0
    %v2557 = vpop.f32.mrb[0].mxu0
    %v2558 = vpop.f32.mrb[0].mxu0
    %2559 = vdwg.mxu0
    %2560 = vmatprep.subr.bf16.mxu0 0
    %2561 = vmatpush1.bf16.msra.mxu0 %v1534
    %2562 = vmatprep.subr.bf16.mxu0 0
    %2563 = vmatpush1.bf16.msra.mxu0 %v1535
    %2564 = vmatprep.subr.bf16.mxu0 0
    %2565 = vmatpush1.bf16.msra.mxu0 %v1536
    %2566 = vmatprep.subr.bf16.mxu0 0
    %2567 = vmatpush1.bf16.msra.mxu0 %v1537
    %2568 = vmatprep.subr.bf16.mxu0 0
    %2569 = vmatpush1.bf16.msra.mxu0 %v1538
    %2570 = vmatprep.subr.bf16.mxu0 0
    %2571 = vmatpush1.bf16.msra.mxu0 %v1539
    %2572 = vmatprep.subr.bf16.mxu0 0
    %2573 = vmatpush1.bf16.msra.mxu0 %v1540
    %2574 = vmatprep.subr.bf16.mxu0 0
    %2575 = vmatpush1.bf16.msra.mxu0 %v1541
    %2576 = vmatprep.subr.bf16.mxu0 0
    %2577 = vmatpush1.bf16.msra.mxu0 %v1542
    %2578 = vmatprep.subr.bf16.mxu0 0
    %2579 = vmatpush1.bf16.msra.mxu0 %v1543
    %2580 = vmatprep.subr.bf16.mxu0 0
    %2581 = vmatpush1.bf16.msra.mxu0 %v1544
    %2582 = vmatprep.subr.bf16.mxu0 0
    %2583 = vmatpush1.bf16.msra.mxu0 %v1545
    %2584 = vmatprep.subr.bf16.mxu0 0
    %2585 = vmatpush1.bf16.msra.mxu0 %v1546
    %2586 = vmatprep.subr.bf16.mxu0 0
    %2587 = vmatpush1.bf16.msra.mxu0 %v1547
    %2588 = vmatprep.subr.bf16.mxu0 0
    %2589 = vmatpush1.bf16.msra.mxu0 %v1548
    %2590 = vmatprep.subr.bf16.mxu0 0
    %2591 = vmatpush1.bf16.msra.mxu0 %v1549
    %2592 = vmatprep.mubr.bf16.mxu0 %v2517
    %2593 = vmatmul.mubr.bf16.gmra.mrb[0].mxu0 %v2516
    %v2594 = vpop.f32.mrb[0].mxu0
    %v2595 = vadd.f32 %v2555, %v2594
    %v2596 = vpop.f32.mrb[0].mxu0
    %v2597 = vpop.f32.mrb[0].mxu0
    %v2598 = vpop.f32.mrb[0].mxu0
    %2599 = vdwg.mxu0
    %2600 = vmatprep.subr.bf16.mxu0 0
    %2601 = vmatpush1.bf16.msra.mxu0 %v1550
    %2602 = vmatprep.subr.bf16.mxu0 0
    %2603 = vmatpush1.bf16.msra.mxu0 %v1551
    %2604 = vmatprep.subr.bf16.mxu0 0
    %2605 = vmatpush1.bf16.msra.mxu0 %v1552
    %2606 = vmatprep.subr.bf16.mxu0 0
    %2607 = vmatpush1.bf16.msra.mxu0 %v1553
    %2608 = vmatprep.subr.bf16.mxu0 0
    %2609 = vmatpush1.bf16.msra.mxu0 %v1554
    %2610 = vmatprep.subr.bf16.mxu0 0
    %2611 = vmatpush1.bf16.msra.mxu0 %v1555
    %2612 = vmatprep.subr.bf16.mxu0 0
    %2613 = vmatpush1.bf16.msra.mxu0 %v1556
    %2614 = vmatprep.subr.bf16.mxu0 0
    %2615 = vmatpush1.bf16.msra.mxu0 %v1557
    %2616 = vmatprep.subr.bf16.mxu0 0
    %2617 = vmatpush1.bf16.msra.mxu0 %v1558
    %2618 = vmatprep.subr.bf16.mxu0 0
    %2619 = vmatpush1.bf16.msra.mxu0 %v1559
    %2620 = vmatprep.subr.bf16.mxu0 0
    %2621 = vmatpush1.bf16.msra.mxu0 %v1560
    %2622 = vmatprep.subr.bf16.mxu0 0
    %2623 = vmatpush1.bf16.msra.mxu0 %v1561
    %2624 = vmatprep.subr.bf16.mxu0 0
    %2625 = vmatpush1.bf16.msra.mxu0 %v1562
    %2626 = vmatprep.subr.bf16.mxu0 0
    %2627 = vmatpush1.bf16.msra.mxu0 %v1563
    %2628 = vmatprep.subr.bf16.mxu0 0
    %2629 = vmatpush1.bf16.msra.mxu0 %v1564
    %2630 = vmatprep.subr.bf16.mxu0 0
    %2631 = vmatpush1.bf16.msra.mxu0 %v1565
    %2632 = vmatprep.mubr.bf16.mxu0 %v2519
    %2633 = vmatmul.mubr.bf16.gmra.mrb[0].mxu0 %v2518
    %v2634 = vpop.f32.mrb[0].mxu0
    %v2635 = vadd.f32 %v2595, %v2634
    %v2636 = vpop.f32.mrb[0].mxu0
    %v2637 = vpop.f32.mrb[0].mxu0
    %v2638 = vpop.f32.mrb[0].mxu0
    %2639 = vdwg.mxu0
    %v2640 = vadd.f32 %v638, %v2635
    %v2641 = vmax.f32 %v2640, 0.0
    %v2642 = vpack.c.bf16 %v2641, %v2641
    %2643 = vmatprep.subr.bf16.mxu0 0
    %2644 = vmatpush1.bf16.msra.mxu0 %v710
    %2645 = vmatprep.subr.bf16.mxu0 0
    %2646 = vmatpush1.bf16.msra.mxu0 %v711
    %2647 = vmatprep.subr.bf16.mxu0 0
    %2648 = vmatpush1.bf16.msra.mxu0 %v712
    %2649 = vmatprep.subr.bf16.mxu0 0
    %2650 = vmatpush1.bf16.msra.mxu0 %v713
    %2651 = vmatprep.subr.bf16.mxu0 0
    %2652 = vmatpush1.bf16.msra.mxu0 %v714
    %2653 = vmatprep.subr.bf16.mxu0 0
    %2654 = vmatpush1.bf16.msra.mxu0 %v715
    %2655 = vmatprep.subr.bf16.mxu0 0
    %2656 = vmatpush1.bf16.msra.mxu0 %v716
    %2657 = vmatprep.subr.bf16.mxu0 0
    %2658 = vmatpush1.bf16.msra.mxu0 %v717
    %2659 = vmatprep.subr.bf16.mxu0 0
    %2660 = vmatpush1.bf16.msra.mxu0 0
    %2661 = vmatprep.subr.bf16.mxu0 0
    %2662 = vmatpush1.bf16.msra.mxu0 0
    %2663 = vmatprep.subr.bf16.mxu0 0
    %2664 = vmatpush1.bf16.msra.mxu0 0
    %2665 = vmatprep.subr.bf16.mxu0 0
    %2666 = vmatpush1.bf16.msra.mxu0 0
    %2667 = vmatprep.subr.bf16.mxu0 0
    %2668 = vmatpush1.bf16.msra.mxu0 0
    %2669 = vmatprep.subr.bf16.mxu0 0
    %2670 = vmatpush1.bf16.msra.mxu0 0
    %2671 = vmatprep.subr.bf16.mxu0 0
    %2672 = vmatpush1.bf16.msra.mxu0 0
    %2673 = vmatprep.subr.bf16.mxu0 0
    %2674 = vmatpush1.bf16.msra.mxu0 0
    %2675 = vmatprep.mubr.bf16.mxu0 0
    %2676 = vmatmul.mubr.bf16.gmra.mrb[0].mxu0 %v2642
    %v2677 = vpop.f32.mrb[0].mxu0
    %v2678 = vadd.f32 0.0, %v2677
    %v2679 = vpop.f32.mrb[0].mxu0
    %v2680 = vpop.f32.mrb[0].mxu0
    %v2681 = vpop.f32.mrb[0].mxu0
    %2682 = vdwg.mxu0
    %v2683 = vadd.f32 %v2382, %v2678
    %v2684 = vadd.f32 %v2683, %v771
    %v2685 = vmax.f32 %v2684, 0.0
    %v2686 = vpack.c.bf16 %v2685, %v2685
    %2687 = vmatprep.subr.bf16.mxu0 %v1000
    %2688 = vmatpush1.bf16.msra.mxu0 %v999
    %2689 = vmatprep.subr.bf16.mxu0 %v1006
    %2690 = vmatpush1.bf16.msra.mxu0 %v1005
    %2691 = vmatprep.subr.bf16.mxu0 %v1012
    %2692 = vmatpush1.bf16.msra.mxu0 %v1011
    %2693 = vmatprep.subr.bf16.mxu0 %v1018
    %2694 = vmatpush1.bf16.msra.mxu0 %v1017
    %2695 = vmatprep.subr.bf16.mxu0 %v1024
    %2696 = vmatpush1.bf16.msra.mxu0 %v1023
    %2697 = vmatprep.subr.bf16.mxu0 %v1030
    %2698 = vmatpush1.bf16.msra.mxu0 %v1029
    %2699 = vmatprep.subr.bf16.mxu0 %v1036
    %2700 = vmatpush1.bf16.msra.mxu0 %v1035
    %2701 = vmatprep.subr.bf16.mxu0 %v1042
    %2702 = vmatpush1.bf16.msra.mxu0 %v1041
    %2703 = vmatprep.subr.bf16.mxu0 0
    %2704 = vmatpush1.bf16.msra.mxu0 0
    %2705 = vmatprep.subr.bf16.mxu0 0
    %2706 = vmatpush1.bf16.msra.mxu0 0
    %2707 = vmatprep.subr.bf16.mxu0 0
    %2708 = vmatpush1.bf16.msra.mxu0 0
    %2709 = vmatprep.subr.bf16.mxu0 0
    %2710 = vmatpush1.bf16.msra.mxu0 0
    %2711 = vmatprep.subr.bf16.mxu0 0
    %2712 = vmatpush1.bf16.msra.mxu0 0
    %2713 = vmatprep.subr.bf16.mxu0 0
    %2714 = vmatpush1.bf16.msra.mxu0 0
    %2715 = vmatprep.subr.bf16.mxu0 0
    %2716 = vmatpush1.bf16.msra.mxu0 0
    %2717 = vmatprep.subr.bf16.mxu0 0
    %2718 = vmatpush1.bf16.msra.mxu0 0
    %2719 = vmatprep.mubr.bf16.mxu0 0
    %2720 = vmatmul.mubr.bf16.gmra.mrb[0].mxu0 %v2686
    %v2721 = vpop.f32.mrb[0].mxu0
    %v2722 = vadd.f32 %v828, %v2721
    %v2723 = vpop.f32.mrb[0].mxu0
    %v2724 = vadd.f32 %v832, %v2723
    %v2725 = vpop.f32.mrb[0].mxu0
    %v2726 = vpop.f32.mrb[0].mxu0
    %2727 = vdwg.mxu0
    %2728 = vmatprep.subr.bf16.mxu0 %v1002
    %2729 = vmatpush1.bf16.msra.mxu0 %v1001
    %2730 = vmatprep.subr.bf16.mxu0 %v1008
    %2731 = vmatpush1.bf16.msra.mxu0 %v1007
    %2732 = vmatprep.subr.bf16.mxu0 %v1014
    %2733 = vmatpush1.bf16.msra.mxu0 %v1013
    %2734 = vmatprep.subr.bf16.mxu0 %v1020
    %2735 = vmatpush1.bf16.msra.mxu0 %v1019
    %2736 = vmatprep.subr.bf16.mxu0 %v1026
    %2737 = vmatpush1.bf16.msra.mxu0 %v1025
    %2738 = vmatprep.subr.bf16.mxu0 %v1032
    %2739 = vmatpush1.bf16.msra.mxu0 %v1031
    %2740 = vmatprep.subr.bf16.mxu0 %v1038
    %2741 = vmatpush1.bf16.msra.mxu0 %v1037
    %2742 = vmatprep.subr.bf16.mxu0 %v1044
    %2743 = vmatpush1.bf16.msra.mxu0 %v1043
    %2744 = vmatprep.subr.bf16.mxu0 0
    %2745 = vmatpush1.bf16.msra.mxu0 0
    %2746 = vmatprep.subr.bf16.mxu0 0
    %2747 = vmatpush1.bf16.msra.mxu0 0
    %2748 = vmatprep.subr.bf16.mxu0 0
    %2749 = vmatpush1.bf16.msra.mxu0 0
    %2750 = vmatprep.subr.bf16.mxu0 0
    %2751 = vmatpush1.bf16.msra.mxu0 0
    %2752 = vmatprep.subr.bf16.mxu0 0
    %2753 = vmatpush1.bf16.msra.mxu0 0
    %2754 = vmatprep.subr.bf16.mxu0 0
    %2755 = vmatpush1.bf16.msra.mxu0 0
    %2756 = vmatprep.subr.bf16.mxu0 0
    %2757 = vmatpush1.bf16.msra.mxu0 0
    %2758 = vmatprep.subr.bf16.mxu0 0
    %2759 = vmatpush1.bf16.msra.mxu0 0
    %2760 = vmatprep.mubr.bf16.mxu0 0
    %2761 = vmatmul.mubr.bf16.gmra.mrb[0].mxu0 %v2686
    %v2762 = vpop.f32.mrb[0].mxu0
    %v2763 = vadd.f32 %v836, %v2762
    %v2764 = vpop.f32.mrb[0].mxu0
    %v2765 = vadd.f32 %v840, %v2764
    %v2766 = vpop.f32.mrb[0].mxu0
    %v2767 = vpop.f32.mrb[0].mxu0
    %2768 = vdwg.mxu0
    %2769 = vmatprep.subr.bf16.mxu0 %v1004
    %2770 = vmatpush1.bf16.msra.mxu0 %v1003
    %2771 = vmatprep.subr.bf16.mxu0 %v1010
    %2772 = vmatpush1.bf16.msra.mxu0 %v1009
    %2773 = vmatprep.subr.bf16.mxu0 %v1016
    %2774 = vmatpush1.bf16.msra.mxu0 %v1015
    %2775 = vmatprep.subr.bf16.mxu0 %v1022
    %2776 = vmatpush1.bf16.msra.mxu0 %v1021
    %2777 = vmatprep.subr.bf16.mxu0 %v1028
    %2778 = vmatpush1.bf16.msra.mxu0 %v1027
    %2779 = vmatprep.subr.bf16.mxu0 %v1034
    %2780 = vmatpush1.bf16.msra.mxu0 %v1033
    %2781 = vmatprep.subr.bf16.mxu0 %v1040
    %2782 = vmatpush1.bf16.msra.mxu0 %v1039
    %2783 = vmatprep.subr.bf16.mxu0 %v1046
    %2784 = vmatpush1.bf16.msra.mxu0 %v1045
    %2785 = vmatprep.subr.bf16.mxu0 0
    %2786 = vmatpush1.bf16.msra.mxu0 0
    %2787 = vmatprep.subr.bf16.mxu0 0
    %2788 = vmatpush1.bf16.msra.mxu0 0
    %2789 = vmatprep.subr.bf16.mxu0 0
    %2790 = vmatpush1.bf16.msra.mxu0 0
    %2791 = vmatprep.subr.bf16.mxu0 0
    %2792 = vmatpush1.bf16.msra.mxu0 0
    %2793 = vmatprep.subr.bf16.mxu0 0
    %2794 = vmatpush1.bf16.msra.mxu0 0
    %2795 = vmatprep.subr.bf16.mxu0 0
    %2796 = vmatpush1.bf16.msra.mxu0 0
    %2797 = vmatprep.subr.bf16.mxu0 0
    %2798 = vmatpush1.bf16.msra.mxu0 0
    %2799 = vmatprep.subr.bf16.mxu0 0
    %2800 = vmatpush1.bf16.msra.mxu0 0
    %2801 = vmatprep.mubr.bf16.mxu0 0
    %2802 = vmatmul.mubr.bf16.gmra.mrb[0].mxu0 %v2686
    %v2803 = vpop.f32.mrb[0].mxu0
    %v2804 = vadd.f32 %v844, %v2803
    %v2805 = vpop.f32.mrb[0].mxu0
    %v2806 = vadd.f32 %v848, %v2805
    %v2807 = vpop.f32.mrb[0].mxu0
    %v2808 = vpop.f32.mrb[0].mxu0
    %2809 = vdwg.mxu0
    %v2810 = vtanh.pop %v2722
    %v2811 = vtanh.pop %v2724
    %v2812 = vtanh.pop %v2763
    %v2813 = vtanh.pop %v2765
    %v2814 = vtanh.pop %v2804
    %v2815 = vtanh.pop %v2806
    %v2822 = vcombine.low %v2810, %v2811
    %v2823 = vcombine.low %v2812, %v2813
    %v2825 = vunpack.c.l.s4 1983009808
    %v2826 = vunpack.c.0.s8 %v2825
    %v2827 = vlaneseq
    %v2828 = vshrl.u32 %v2827, 7
    %v2829 = vsub.s32 %v2826, %v2828
    %v2830 = vrot.slane %v2822, %v2829
    %v2832 = vunpack.c.l.s4 1983009808
    %v2833 = vunpack.c.0.s8 %v2832
    %v2834 = vlaneseq
    %v2835 = vshrl.u32 %v2834, 7
    %v2836 = vsub.s32 %v2833, %v2835
    %v2837 = vrot.slane %v2823, %v2836
    %v2838 = vcombine.low %v2830, %v2837
    %v2839 = vcombine.low %v2814, %v2815
    %v2841 = vunpack.c.l.s4 1983009808
    %v2842 = vunpack.c.0.s8 %v2841
    %v2843 = vlaneseq
    %v2844 = vshrl.u32 %v2843, 7
    %v2845 = vsub.s32 %v2842, %v2844
    %v2846 = vrot.slane %v2839, %v2845
    %2849 = vst [vmem:[%s10] sm:$0xff] %v2838
    %2850 = vst [vmem:[%s10 + $0x8] sm:$0xf] %v2846
    // Predicated region
    $region54: #{restyle_psp_forward.1} parent=1 // pred_check
      _
    $region55: #{restyle_psp_forward.1} parent=1 // pred_check_branch
      %2852 = sbr.rel (0) target = $region57
    $region56: #{restyle_psp_forward.1} parent=1 // pred_region
      _
    $region57: #{restyle_psp_forward.1} parent=1 // pred_fallthru
      _
    // Predicated region
    $region58: #{restyle_psp_forward.1} parent=1 // pred_check
      _
    $region59: #{restyle_psp_forward.1} parent=1 // pred_check_branch
      %2854 = sbr.rel (0) target = $region61
    $region60: #{restyle_psp_forward.1} parent=1 // pred_region
      _
    $region61: #{restyle_psp_forward.1} parent=1 // pred_fallthru
      _
    %2855 = vsyncpa [#allocation3], 1
    %2856 = vsyncpa [#allocation5], 1

</llo_original>
